<compile_context>
chip_gen: v7x
topology: tpu7x:2x2x1
jax: 0.10.0
libtpu: 0.0.40
codegen_flags: <defaults>
</compile_context>

<pallas_src>
import math

import jax
import jax.numpy as jnp
from jax.experimental import pallas as pl
from jax.experimental.pallas import tpu as pltpu


def _round_up(x, m):
    return (x + m - 1) // m * m


def _decoder_kernel(x_ref,
                    w1_ref, b1_ref,
                    w2_ref, b2_ref,
                    w3_ref, b3_ref,
                    w4_ref, b4_ref,
                    o_ref):
    # Entire Decoder MLP fused per batch tile.  Matmul operands are in the
    # weights' dtype (bf16 by default); accumulation is always f32.
    cdt = w1_ref.dtype

    x = x_ref[...]  # already in compute dtype (cast/padded in prepare/forward)

    h = jnp.dot(x, w1_ref[...], preferred_element_type=jnp.float32) + b1_ref[...]
    h = jnp.maximum(h, 0.0).astype(cdt)

    h = jnp.dot(h, w2_ref[...], preferred_element_type=jnp.float32) + b2_ref[...]
    h = jnp.maximum(h, 0.0).astype(cdt)

    h = jnp.dot(h, w3_ref[...], preferred_element_type=jnp.float32) + b3_ref[...]
    h = jnp.maximum(h, 0.0).astype(cdt)

    logits = jnp.dot(h, w4_ref[...], preferred_element_type=jnp.float32) + b4_ref[...]
    o_ref[...] = jax.nn.sigmoid(logits).astype(o_ref.dtype)


def prepare_params(params, n_z, *, use_bf16=True):
    """One-time preparation: zero-pad to lane-aligned dims and cast weights.

    Padding is mathematically inert: padded weight rows/cols and biases are
    zero, so padded hidden lanes stay zero through ReLU.  The final layer is
    padded only on its contraction dim; the 784 output lanes are kept so the
    kernel writes the module's output directly (no post-kernel lane slice).
    """
    cdt = jnp.bfloat16 if use_bf16 else jnp.float32

    d1 = params["w1"].shape[1]   # 50
    d2 = params["w2"].shape[1]   # 200
    d3 = params["w3"].shape[1]   # 400
    d4 = params["w4"].shape[1]   # 784

    K = _round_up(n_z, 128)
    H1, H2, H3 = (_round_up(d, 128) for d in (d1, d2, d3))

    def pad_w(w, ki, ko):
        wp = jnp.zeros((ki, ko), jnp.float32)
        wp = wp.at[: w.shape[0], : w.shape[1]].set(jnp.asarray(w, jnp.float32))
        return wp.astype(cdt)

    def pad_b(b, ko):
        b = jnp.asarray(b, jnp.float32).reshape(1, -1)
        return jnp.zeros((1, ko), jnp.float32).at[:, : b.shape[1]].set(b)

    prepared = {
        "w1": pad_w(params["w1"], K, H1),  "b1": pad_b(params["b1"], H1),
        "w2": pad_w(params["w2"], H1, H2), "b2": pad_b(params["b2"], H2),
        "w3": pad_w(params["w3"], H2, H3), "b3": pad_b(params["b3"], H3),
        "w4": pad_w(params["w4"], H3, d4), "b4": pad_b(params["b4"], d4),
    }
    return jax.device_put(prepared)


def decoder_forward(x, prepared, *, batch_tile=256):
    """x: [B, n_z] float32.  prepared: output of `prepare_params`.

    Returns [B, 1, 28, 28] float32 (same as the PyTorch Decoder).
    """
    B, n_z = x.shape
    w1, b1 = prepared["w1"], prepared["b1"]
    w2, b2 = prepared["w2"], prepared["b2"]
    w3, b3 = prepared["w3"], prepared["b3"]
    w4, b4 = prepared["w4"], prepared["b4"]

    cdt = w1.dtype
    K = w1.shape[0]            # lane-padded n_z
    d4 = w4.shape[1]           # 784 (unpadded output lanes)
    side = int(math.isqrt(d4))
    assert side * side == d4, "final layer must produce a square image"

    # Batch tile: multiple of 16 rows (bf16 packs 16 rows/vreg; also fine for
    # f32).  Aim for >= 4 grid steps so the x DMA and the 784-wide f32 output
    # writeback overlap with compute, and megacore has work to shard.
    align = 16
    bt = max(align, min(_round_up(batch_tile, align),
                        _round_up(pl.cdiv(B, 4), align)))
    B_pad = _round_up(B, bt)

    # Per-call input prep is only the (tiny) x cast/pad: B x 128 elements.
    xp = x.astype(cdt)
    if (B_pad != B) or (K != n_z):
        xp = jnp.zeros((B_pad, K), dtype=cdt).at[:B, :n_z].set(xp)

    grid = (B_pad // bt,)

    def full_spec(arr):
        # Weights/biases: full array resident every step (constant index_map).
        return pl.BlockSpec(arr.shape, lambda i: (0, 0))

    # Scheduler hint so XLA can overlap this small kernel with surrounding ops.
    H1, H2, H3 = w2.shape[0], w3.shape[0], w4.shape[0]
    flops = 2 * B_pad * (K * H1 + H1 * H2 + H2 * H3 + H3 * d4)
    bytes_accessed = (
        xp.size * xp.dtype.itemsize
        + sum(a.size * a.dtype.itemsize
              for a in (w1, b1, w2, b2, w3, b3, w4, b4))
        + B_pad * d4 * 4
    )
    cost = pl.CostEstimate(flops=flops,
                           transcendentals=B_pad * d4,
                           bytes_accessed=bytes_accessed)

    out = pl.pallas_call(
        _decoder_kernel,
        out_shape=jax.ShapeDtypeStruct((B_pad, d4), jnp.float32),
        grid_spec=pltpu.PrefetchScalarGridSpec(
            num_scalar_prefetch=0,
            grid=grid,
            in_specs=[
                pl.BlockSpec((bt, K), lambda i: (i, 0)),   # x tile
                full_spec(w1), full_spec(b1),
                full_spec(w2), full_spec(b2),
                full_spec(w3), full_spec(b3),
                full_spec(w4), full_spec(b4),
            ],
            out_specs=pl.BlockSpec((bt, d4), lambda i: (i, 0)),
        ),
        compiler_params=pltpu.CompilerParams(
            dimension_semantics=("parallel",)),
        cost_estimate=cost,
    )(xp, w1, b1, w2, b2, w3, b3, w4, b4)

    # Only batch padding (if any) is dropped; the 784-lane output is already
    # exact, so the reshape to the image view is a free contiguous reshape.
    if B_pad != B:
        out = out[:B]
    return out.reshape(B, 1, side, side)


def init_params(key, n_z):
    """Deterministic init mimicking nn.Linear default U(-1/sqrt(fan_in), +).

    Weights stored pre-transposed as [in_features, out_features].
    """
    dims = [(n_z, 50), (50, 200), (200, 400), (400, 784)]
    params = {}
    keys = jax.random.split(key, 2 * len(dims))
    for idx, (fan_in, fan_out) in enumerate(dims):
        bound = 1.0 / math.sqrt(float(fan_in))
        w = jax.random.uniform(keys[2 * idx], (fan_in, fan_out),
                               minval=-bound, maxval=bound, dtype=jnp.float32)
        b = jax.random.uniform(keys[2 * idx + 1], (fan_out,),
                               minval=-bound, maxval=bound, dtype=jnp.float32)
        params[f"w{idx + 1}"] = w
        params[f"b{idx + 1}"] = b
    return params


def reference_forward(x, p):
    """Pure-JAX f32 reference of the Decoder forward."""
    h = jnp.maximum(x @ p["w1"] + p["b1"], 0.0)
    h = jnp.maximum(h @ p["w2"] + p["b2"], 0.0)
    h = jnp.maximum(h @ p["w3"] + p["b3"], 0.0)
    y = jax.nn.sigmoid(h @ p["w4"] + p["b4"])
    return y.reshape(-1, 1, 28, 28)


if __name__ == "__main__":
    # Small shapes consistent with the module: batch=8, latent n_z=8.
    B, n_z = 8, 8

    key = jax.random.PRNGKey(0)
    kx, kp = jax.random.split(key)
    x = jax.random.normal(kx, (B, n_z), dtype=jnp.float32)
    params = init_params(kp, n_z)

    # One-time preparation (padding + bf16 cast hoisted out of the call path).
    prepared_bf16 = prepare_params(params, n_z, use_bf16=True)
    prepared_f32 = prepare_params(params, n_z, use_bf16=False)

    out = decoder_forward(x, prepared_bf16)    # bf16 matmuls, f32 accumulation
    out = jax.block_until_ready(out)

    ref = reference_forward(x, params)
    assert out.shape == (B, 1, 28, 28)
    # bf16 matmul operands with f32 accumulation -> loose tolerance vs f32 ref.
    assert jnp.allclose(out, ref, atol=2e-2, rtol=0.0), "mismatch vs JAX reference"

    # Also verify exact-path correctness with f32 matmuls.
    out_f32 = jax.block_until_ready(decoder_forward(x, prepared_f32))
    assert jnp.allclose(out_f32, ref, atol=1e-5, rtol=1e-5), "f32 path mismatch"

    print("KERNEL_OK")
</pallas_src>

<mosaic_0001>
module attributes {stable_mosaic.version = 11 : i64} {
  func.func @_decoder_kernel(%arg0: i32, %arg1: memref<16x128xbf16, #tpu.memory_space<vmem>>, %arg2: memref<128x128xbf16, #tpu.memory_space<vmem>>, %arg3: memref<1x128xf32, #tpu.memory_space<vmem>>, %arg4: memref<128x256xbf16, #tpu.memory_space<vmem>>, %arg5: memref<1x256xf32, #tpu.memory_space<vmem>>, %arg6: memref<256x512xbf16, #tpu.memory_space<vmem>>, %arg7: memref<1x512xf32, #tpu.memory_space<vmem>>, %arg8: memref<512x784xbf16, #tpu.memory_space<vmem>>, %arg9: memref<1x784xf32, #tpu.memory_space<vmem>>, %arg10: memref<16x784xf32, #tpu.memory_space<vmem>>) attributes {dimension_semantics = [#tpu.dimension_semantics<parallel>], iteration_bounds = array<i64: 1>, scalar_prefetch = 0 : i64, scratch_operands = 0 : i64, tpu.core_type = #tpu.core_type<tc>, window_params = [{transform_indices = @transform_0, window_bounds = array<i64: 16, 128>}, {pipeline_mode = #tpu.pipeline_mode<synchronous>, transform_indices = @transform_1, window_bounds = array<i64: 128, 128>}, {pipeline_mode = #tpu.pipeline_mode<synchronous>, transform_indices = @transform_2, window_bounds = array<i64: 1, 128>}, {pipeline_mode = #tpu.pipeline_mode<synchronous>, transform_indices = @transform_3, window_bounds = array<i64: 128, 256>}, {pipeline_mode = #tpu.pipeline_mode<synchronous>, transform_indices = @transform_4, window_bounds = array<i64: 1, 256>}, {pipeline_mode = #tpu.pipeline_mode<synchronous>, transform_indices = @transform_5, window_bounds = array<i64: 256, 512>}, {pipeline_mode = #tpu.pipeline_mode<synchronous>, transform_indices = @transform_6, window_bounds = array<i64: 1, 512>}, {pipeline_mode = #tpu.pipeline_mode<synchronous>, transform_indices = @transform_7, window_bounds = array<i64: 512, 784>}, {pipeline_mode = #tpu.pipeline_mode<synchronous>, transform_indices = @transform_8, window_bounds = array<i64: 1, 784>}, {transform_indices = @transform_9, window_bounds = array<i64: 16, 784>}]} {
    %c0 = arith.constant 0 : index
    %c0_0 = arith.constant 0 : index
    %0 = vector.load %arg1[%c0, %c0_0] : memref<16x128xbf16, #tpu.memory_space<vmem>>, vector<16x128xbf16>
    %c0_1 = arith.constant 0 : index
    %c0_2 = arith.constant 0 : index
    %1 = vector.load %arg2[%c0_1, %c0_2] : memref<128x128xbf16, #tpu.memory_space<vmem>>, vector<128x128xbf16>
    %cst = arith.constant dense<0.000000e+00> : vector<16x128xf32>
    %2 = tpu.matmul %0, %1, %cst {dimension_numbers = #tpu.dot_dimension_numbers<[1], [0], [0], [1], [0, 0, 1, 1], [], []>} : vector<16x128xbf16>, vector<128x128xbf16>, vector<16x128xf32> -> vector<16x128xf32>
    %c0_3 = arith.constant 0 : index
    %c0_4 = arith.constant 0 : index
    %3 = vector.load %arg3[%c0_3, %c0_4] : memref<1x128xf32, #tpu.memory_space<vmem>>, vector<1x128xf32>
    %4 = vector.broadcast %3 : vector<1x128xf32> to vector<16x128xf32>
    %5 = arith.addf %2, %4 : vector<16x128xf32>
    %cst_5 = arith.constant 0.000000e+00 : f32
    %6 = vector.broadcast %cst_5 : f32 to vector<16x128xf32>
    %7 = arith.maximumf %5, %6 : vector<16x128xf32>
    %8 = arith.truncf %7 : vector<16x128xf32> to vector<16x128xbf16>
    %c0_6 = arith.constant 0 : index
    %c0_7 = arith.constant 0 : index
    %9 = vector.load %arg4[%c0_6, %c0_7] : memref<128x256xbf16, #tpu.memory_space<vmem>>, vector<128x256xbf16>
    %cst_8 = arith.constant dense<0.000000e+00> : vector<16x256xf32>
    %10 = tpu.matmul %8, %9, %cst_8 {dimension_numbers = #tpu.dot_dimension_numbers<[1], [0], [0], [1], [0, 0, 1, 1], [], []>} : vector<16x128xbf16>, vector<128x256xbf16>, vector<16x256xf32> -> vector<16x256xf32>
    %c0_9 = arith.constant 0 : index
    %c0_10 = arith.constant 0 : index
    %11 = vector.load %arg5[%c0_9, %c0_10] : memref<1x256xf32, #tpu.memory_space<vmem>>, vector<1x256xf32>
    %12 = vector.broadcast %11 : vector<1x256xf32> to vector<16x256xf32>
    %13 = arith.addf %10, %12 : vector<16x256xf32>
    %cst_11 = arith.constant 0.000000e+00 : f32
    %14 = vector.broadcast %cst_11 : f32 to vector<16x256xf32>
    %15 = arith.maximumf %13, %14 : vector<16x256xf32>
    %16 = arith.truncf %15 : vector<16x256xf32> to vector<16x256xbf16>
    %c0_12 = arith.constant 0 : index
    %c0_13 = arith.constant 0 : index
    %17 = vector.load %arg6[%c0_12, %c0_13] : memref<256x512xbf16, #tpu.memory_space<vmem>>, vector<256x512xbf16>
    %cst_14 = arith.constant dense<0.000000e+00> : vector<16x512xf32>
    %18 = tpu.matmul %16, %17, %cst_14 {dimension_numbers = #tpu.dot_dimension_numbers<[1], [0], [0], [1], [0, 0, 1, 1], [], []>} : vector<16x256xbf16>, vector<256x512xbf16>, vector<16x512xf32> -> vector<16x512xf32>
    %c0_15 = arith.constant 0 : index
    %c0_16 = arith.constant 0 : index
    %19 = vector.load %arg7[%c0_15, %c0_16] : memref<1x512xf32, #tpu.memory_space<vmem>>, vector<1x512xf32>
    %20 = vector.broadcast %19 : vector<1x512xf32> to vector<16x512xf32>
    %21 = arith.addf %18, %20 : vector<16x512xf32>
    %cst_17 = arith.constant 0.000000e+00 : f32
    %22 = vector.broadcast %cst_17 : f32 to vector<16x512xf32>
    %23 = arith.maximumf %21, %22 : vector<16x512xf32>
    %24 = arith.truncf %23 : vector<16x512xf32> to vector<16x512xbf16>
    %c0_18 = arith.constant 0 : index
    %c0_19 = arith.constant 0 : index
    %25 = vector.load %arg8[%c0_18, %c0_19] : memref<512x784xbf16, #tpu.memory_space<vmem>>, vector<512x784xbf16>
    %cst_20 = arith.constant dense<0.000000e+00> : vector<16x784xf32>
    %26 = tpu.matmul %24, %25, %cst_20 {dimension_numbers = #tpu.dot_dimension_numbers<[1], [0], [0], [1], [0, 0, 1, 1], [], []>} : vector<16x512xbf16>, vector<512x784xbf16>, vector<16x784xf32> -> vector<16x784xf32>
    %c0_21 = arith.constant 0 : index
    %c0_22 = arith.constant 0 : index
    %27 = vector.load %arg9[%c0_21, %c0_22] : memref<1x784xf32, #tpu.memory_space<vmem>>, vector<1x784xf32>
    %28 = vector.broadcast %27 : vector<1x784xf32> to vector<16x784xf32>
    %29 = arith.addf %26, %28 : vector<16x784xf32>
    %30 = arith.negf %29 : vector<16x784xf32>
    %31 = math.exp %30 : vector<16x784xf32>
    %cst_23 = arith.constant 1.000000e+00 : f32
    %32 = vector.broadcast %cst_23 : f32 to vector<16x784xf32>
    %33 = arith.addf %32, %31 : vector<16x784xf32>
    %34 = arith.divf %32, %33 : vector<16x784xf32>
    %c0_24 = arith.constant 0 : index
    %c0_25 = arith.constant 0 : index
    %35 = vector.load %arg10[%c0_24, %c0_25] : memref<16x784xf32, #tpu.memory_space<vmem>>, vector<16x784xf32>
    tpu.vector_store %arg10[%c0_24, %c0_25], %34 {strides = array<i32>} : memref<16x784xf32, #tpu.memory_space<vmem>>, vector<16x784xf32>,
    return
  }
  func.func @transform_0(%arg0: i32) -> (i32, i32) {
    %c0_i32 = arith.constant 0 : i32
    %c0_i32_0 = arith.constant 0 : i32
    return %arg0, %c0_i32 : i32, i32
  }
  func.func @transform_1(%arg0: i32) -> (i32, i32) {
    %c0_i32 = arith.constant 0 : i32
    %c0_i32_0 = arith.constant 0 : i32
    %c0_i32_1 = arith.constant 0 : i32
    return %c0_i32, %c0_i32_0 : i32, i32
  }
  func.func @transform_2(%arg0: i32) -> (i32, i32) {
    %c0_i32 = arith.constant 0 : i32
    %c0_i32_0 = arith.constant 0 : i32
    %c0_i32_1 = arith.constant 0 : i32
    return %c0_i32, %c0_i32_0 : i32, i32
  }
  func.func @transform_3(%arg0: i32) -> (i32, i32) {
    %c0_i32 = arith.constant 0 : i32
    %c0_i32_0 = arith.constant 0 : i32
    %c0_i32_1 = arith.constant 0 : i32
    return %c0_i32, %c0_i32_0 : i32, i32
  }
  func.func @transform_4(%arg0: i32) -> (i32, i32) {
    %c0_i32 = arith.constant 0 : i32
    %c0_i32_0 = arith.constant 0 : i32
    %c0_i32_1 = arith.constant 0 : i32
    return %c0_i32, %c0_i32_0 : i32, i32
  }
  func.func @transform_5(%arg0: i32) -> (i32, i32) {
    %c0_i32 = arith.constant 0 : i32
    %c0_i32_0 = arith.constant 0 : i32
    %c0_i32_1 = arith.constant 0 : i32
    return %c0_i32, %c0_i32_0 : i32, i32
  }
  func.func @transform_6(%arg0: i32) -> (i32, i32) {
    %c0_i32 = arith.constant 0 : i32
    %c0_i32_0 = arith.constant 0 : i32
    %c0_i32_1 = arith.constant 0 : i32
    return %c0_i32, %c0_i32_0 : i32, i32
  }
  func.func @transform_7(%arg0: i32) -> (i32, i32) {
    %c0_i32 = arith.constant 0 : i32
    %c0_i32_0 = arith.constant 0 : i32
    %c0_i32_1 = arith.constant 0 : i32
    return %c0_i32, %c0_i32_0 : i32, i32
  }
  func.func @transform_8(%arg0: i32) -> (i32, i32) {
    %c0_i32 = arith.constant 0 : i32
    %c0_i32_0 = arith.constant 0 : i32
    %c0_i32_1 = arith.constant 0 : i32
    return %c0_i32, %c0_i32_0 : i32, i32
  }
  func.func @transform_9(%arg0: i32) -> (i32, i32) {
    %c0_i32 = arith.constant 0 : i32
    %c0_i32_0 = arith.constant 0 : i32
    return %arg0, %c0_i32 : i32, i32
  }
}

</mosaic_0001>

<llo_original>
// kernel: tpu_custom_call.1
$region0: #{tpu_custom_call.1}
  #allocation0 [shape = 'u32[]', space=smem, size = 0x4, offset = 0x4, fixed_abs, tag = 'smem constant byte address 0x4 - core index']
  #allocation1 [shape = 'u32[144,128]{1,0:T(1,128)}', space=vmem, size = 0x12000, scoped, tag = 'internal scratch']
  %s0 = inlined_call_operand.vmem [shape: bf16[16,128], index: 0, kind: input, shape index: {}]
  %s1 = inlined_call_operand.vmem [shape: bf16[128,128], index: 1, kind: input, shape index: {}]
  %s2 = inlined_call_operand.vmem [shape: f32[1,128], index: 2, kind: input, shape index: {}]
  %s3 = inlined_call_operand.vmem [shape: bf16[128,256], index: 3, kind: input, shape index: {}]
  %s4 = inlined_call_operand.vmem [shape: f32[1,256], index: 4, kind: input, shape index: {}]
  %s5 = inlined_call_operand.vmem [shape: bf16[256,512], index: 5, kind: input, shape index: {}]
  %s6 = inlined_call_operand.vmem [shape: f32[1,512], index: 6, kind: input, shape index: {}]
  %s7 = inlined_call_operand.vmem [shape: bf16[512,784], index: 7, kind: input, shape index: {}]
  %s8 = inlined_call_operand.vmem [shape: f32[1,784], index: 8, kind: input, shape index: {}]
  %s9 = inlined_call_operand.hbm [shape: f32[16,784], index: 9, kind: output, shape index: {}]
  %s10 = sld [smem:[#allocation0]]
  $region46: #{tpu_custom_call.1} parent=0
    _
  %s12 = ssub.s32 1, %s10
  %s13 = scalar_select 0, %s12, %s10
  $region1: #{tpu_custom_call.1} parent=0
    #allocation2 [shape = 'u8[57344]{0}', space=vmem, size = 0xe000, scoped, tag = 'output window, operand 0, single buffered']
    #allocation3 [shape = 's32[1]{0}', space=sflag, size = 0x4, scoped, tag = 'scoped memory for tpu_custom_call.1']
    %14 = vsyncpa [#allocation3], 0
    // Predicated region
    $region2: #{tpu_custom_call.1} parent=1 // pred_check
      _
    $region3: #{tpu_custom_call.1} parent=1 // pred_check_branch
      %16 = sbr.rel (0) target = $region5
    $region4: #{tpu_custom_call.1} parent=1 // pred_region
      _
    $region5: #{tpu_custom_call.1} parent=1 // pred_fallthru
      _
    // Predicated region
    $region6: #{tpu_custom_call.1} parent=1 // pred_check
      _
    $region7: #{tpu_custom_call.1} parent=1 // pred_check_branch
      %18 = sbr.rel (0) target = $region9
    $region8: #{tpu_custom_call.1} parent=1 // pred_region
      _
    $region9: #{tpu_custom_call.1} parent=1 // pred_fallthru
      _
    // Predicated region
    $region10: #{tpu_custom_call.1} parent=1 // pred_check
      _
    $region11: #{tpu_custom_call.1} parent=1 // pred_check_branch
      %20 = sbr.rel (0) target = $region13
    $region12: #{tpu_custom_call.1} parent=1 // pred_region
      _
    $region13: #{tpu_custom_call.1} parent=1 // pred_fallthru
      _
    // Predicated region
    $region14: #{tpu_custom_call.1} parent=1 // pred_check
      _
    $region15: #{tpu_custom_call.1} parent=1 // pred_check_branch
      %22 = sbr.rel (0) target = $region17
    $region16: #{tpu_custom_call.1} parent=1 // pred_region
      _
    $region17: #{tpu_custom_call.1} parent=1 // pred_fallthru
      _
    // Predicated region
    $region18: #{tpu_custom_call.1} parent=1 // pred_check
      _
    $region19: #{tpu_custom_call.1} parent=1 // pred_check_branch
      %24 = sbr.rel (0) target = $region21
    $region20: #{tpu_custom_call.1} parent=1 // pred_region
      _
    $region21: #{tpu_custom_call.1} parent=1 // pred_fallthru
      _
    // Predicated region
    $region22: #{tpu_custom_call.1} parent=1 // pred_check
      _
    $region23: #{tpu_custom_call.1} parent=1 // pred_check_branch
      %26 = sbr.rel (0) target = $region25
    $region24: #{tpu_custom_call.1} parent=1 // pred_region
      _
    $region25: #{tpu_custom_call.1} parent=1 // pred_fallthru
      _
    // Predicated region
    $region26: #{tpu_custom_call.1} parent=1 // pred_check
      _
    $region27: #{tpu_custom_call.1} parent=1 // pred_check_branch
      %28 = sbr.rel (0) target = $region29
    $region28: #{tpu_custom_call.1} parent=1 // pred_region
      _
    $region29: #{tpu_custom_call.1} parent=1 // pred_fallthru
      _
    // Predicated region
    $region30: #{tpu_custom_call.1} parent=1 // pred_check
      _
    $region31: #{tpu_custom_call.1} parent=1 // pred_check_branch
      %30 = sbr.rel (0) target = $region33
    $region32: #{tpu_custom_call.1} parent=1 // pred_region
      _
    $region33: #{tpu_custom_call.1} parent=1 // pred_fallthru
      _
    // Predicated region
    $region34: #{tpu_custom_call.1} parent=1 // pred_check
      _
    $region35: #{tpu_custom_call.1} parent=1 // pred_check_branch
      %32 = sbr.rel (0) target = $region37
    $region36: #{tpu_custom_call.1} parent=1 // pred_region
      _
    $region37: #{tpu_custom_call.1} parent=1 // pred_fallthru
      _
    %v34 = vld [vmem:[%s0] sm:$0xf]
    %v35 = vld [vmem:[%s0 + $0x4] sm:$0xf]
    %v36 = vld [vmem:[%s1] sm:$0xf]
    %v37 = vld [vmem:[%s1 + $0x4] sm:$0xf]
    %v38 = vld [vmem:[%s1 + $0x8] sm:$0xf]
    %v39 = vld [vmem:[%s1 + $0xc] sm:$0xf]
    %v40 = vld [vmem:[%s1 + $0x10] sm:$0xf]
    %v41 = vld [vmem:[%s1 + $0x14] sm:$0xf]
    %v42 = vld [vmem:[%s1 + $0x18] sm:$0xf]
    %v43 = vld [vmem:[%s1 + $0x1c] sm:$0xf]
    %v44 = vld [vmem:[%s1 + $0x20] sm:$0xf]
    %v45 = vld [vmem:[%s1 + $0x24] sm:$0xf]
    %v46 = vld [vmem:[%s1 + $0x28] sm:$0xf]
    %v47 = vld [vmem:[%s1 + $0x2c] sm:$0xf]
    %v48 = vld [vmem:[%s1 + $0x30] sm:$0xf]
    %v49 = vld [vmem:[%s1 + $0x34] sm:$0xf]
    %v50 = vld [vmem:[%s1 + $0x38] sm:$0xf]
    %v51 = vld [vmem:[%s1 + $0x3c] sm:$0xf]
    %v52 = vld [vmem:[%s2] sm:$0x1]
    %v54 = vlaneseq
    %v55 = vshrl.u32 %v54, 7
    %v56 = vsub.s32 0, %v55
    %v57 = vrot.slane %v52, %v56
    %v61 = vunpack.c.l.b16 %v34
    %v62 = vunpack.c.l.b16 %v35
    %v63 = vpack.c.b16 %v62, %v61
    %v81 = vunpack.c.l.b16 %v36
    %v82 = vunpack.c.l.b16 %v37
    %v83 = vunpack.c.l.b16 %v38
    %v84 = vunpack.c.l.b16 %v39
    %v85 = vunpack.c.l.b16 %v40
    %v86 = vunpack.c.l.b16 %v41
    %v87 = vunpack.c.l.b16 %v42
    %v88 = vunpack.c.l.b16 %v43
    %v89 = vunpack.c.l.b16 %v44
    %v90 = vunpack.c.l.b16 %v45
    %v91 = vunpack.c.l.b16 %v46
    %v92 = vunpack.c.l.b16 %v47
    %v93 = vunpack.c.l.b16 %v48
    %v94 = vunpack.c.l.b16 %v49
    %v95 = vunpack.c.l.b16 %v50
    %v96 = vunpack.c.l.b16 %v51
    %v97 = vpack.c.b16 %v82, %v81
    %v98 = vpack.c.b16 %v84, %v83
    %v99 = vpack.c.b16 %v86, %v85
    %v100 = vpack.c.b16 %v88, %v87
    %v101 = vpack.c.b16 %v90, %v89
    %v102 = vpack.c.b16 %v92, %v91
    %v103 = vpack.c.b16 %v94, %v93
    %v104 = vpack.c.b16 %v96, %v95
    %113 = vmatprep.subr.bf16.mxu0 0
    %114 = vmatpush1.bf16.msra.mxu0 %v97
    %115 = vmatprep.subr.bf16.mxu0 0
    %116 = vmatpush1.bf16.msra.mxu0 %v98
    %117 = vmatprep.subr.bf16.mxu0 0
    %118 = vmatpush1.bf16.msra.mxu0 %v99
    %119 = vmatprep.subr.bf16.mxu0 0
    %120 = vmatpush1.bf16.msra.mxu0 %v100
    %121 = vmatprep.subr.bf16.mxu0 0
    %122 = vmatpush1.bf16.msra.mxu0 %v101
    %123 = vmatprep.subr.bf16.mxu0 0
    %124 = vmatpush1.bf16.msra.mxu0 %v102
    %125 = vmatprep.subr.bf16.mxu0 0
    %126 = vmatpush1.bf16.msra.mxu0 %v103
    %127 = vmatprep.subr.bf16.mxu0 0
    %128 = vmatpush1.bf16.msra.mxu0 %v104
    %129 = vmatprep.subr.bf16.mxu0 0
    %130 = vmatpush1.bf16.msra.mxu0 0
    %131 = vmatprep.subr.bf16.mxu0 0
    %132 = vmatpush1.bf16.msra.mxu0 0
    %133 = vmatprep.subr.bf16.mxu0 0
    %134 = vmatpush1.bf16.msra.mxu0 0
    %135 = vmatprep.subr.bf16.mxu0 0
    %136 = vmatpush1.bf16.msra.mxu0 0
    %137 = vmatprep.subr.bf16.mxu0 0
    %138 = vmatpush1.bf16.msra.mxu0 0
    %139 = vmatprep.subr.bf16.mxu0 0
    %140 = vmatpush1.bf16.msra.mxu0 0
    %141 = vmatprep.subr.bf16.mxu0 0
    %142 = vmatpush1.bf16.msra.mxu0 0
    %143 = vmatprep.subr.bf16.mxu0 0
    %144 = vmatpush1.bf16.msra.mxu0 0
    %145 = vmatprep.mubr.bf16.mxu0 0
    %146 = vmatmul.mubr.bf16.gmra.mrb[0].mxu0 %v63
    %v147 = vpop.f32.mrb[0].mxu0
    %v148 = vadd.f32 %v57, %v147
    %v149 = vpop.f32.mrb[0].mxu0
    %v150 = vpop.f32.mrb[0].mxu0
    %v151 = vadd.f32 %v57, %v150
    %v152 = vpop.f32.mrb[0].mxu0
    %153 = vdwg.mxu0
    %v154 = vmax.f32 %v148, 0.0
    %v155 = vmax.f32 %v151, 0.0
    %v156 = vpack.c.bf16 %v155, %v154
    %v157 = vld [vmem:[%s3] sm:$0xff]
    %v158 = vld [vmem:[%s3 + $0x8] sm:$0xff]
    %v159 = vld [vmem:[%s3 + $0x10] sm:$0xff]
    %v160 = vld [vmem:[%s3 + $0x18] sm:$0xff]
    %v161 = vld [vmem:[%s3 + $0x20] sm:$0xff]
    %v162 = vld [vmem:[%s3 + $0x28] sm:$0xff]
    %v163 = vld [vmem:[%s3 + $0x30] sm:$0xff]
    %v164 = vld [vmem:[%s3 + $0x38] sm:$0xff]
    %v165 = vld [vmem:[%s3 + $0x40] sm:$0xff]
    %v166 = vld [vmem:[%s3 + $0x48] sm:$0xff]
    %v167 = vld [vmem:[%s3 + $0x50] sm:$0xff]
    %v168 = vld [vmem:[%s3 + $0x58] sm:$0xff]
    %v169 = vld [vmem:[%s3 + $0x60] sm:$0xff]
    %v170 = vld [vmem:[%s3 + $0x68] sm:$0xff]
    %v171 = vld [vmem:[%s3 + $0x70] sm:$0xff]
    %v172 = vld [vmem:[%s3 + $0x78] sm:$0xff]
    %v173 = vld [vmem:[%s4] sm:$0x3]
    %v175 = vlaneseq
    %v176 = vshrl.u32 %v175, 7
    %v177 = vsub.s32 0, %v176
    %v178 = vrot.slane %v173, %v177
    %v179 = vlaneseq
    %v180 = vshrl.u32 %v179, 7
    %v181 = vsub.s32 1, %v180
    %v182 = vrot.slane %v173, %v181
    %v201 = vunpack.c.l.b16 %v157
    %v202 = vunpack.c.h.b16 %v157
    %v203 = vunpack.c.l.b16 %v158
    %v204 = vunpack.c.h.b16 %v158
    %v205 = vunpack.c.l.b16 %v159
    %v206 = vunpack.c.h.b16 %v159
    %v207 = vunpack.c.l.b16 %v160
    %v208 = vunpack.c.h.b16 %v160
    %v209 = vunpack.c.l.b16 %v161
    %v210 = vunpack.c.h.b16 %v161
    %v211 = vunpack.c.l.b16 %v162
    %v212 = vunpack.c.h.b16 %v162
    %v213 = vunpack.c.l.b16 %v163
    %v214 = vunpack.c.h.b16 %v163
    %v215 = vunpack.c.l.b16 %v164
    %v216 = vunpack.c.h.b16 %v164
    %v217 = vunpack.c.l.b16 %v165
    %v218 = vunpack.c.h.b16 %v165
    %v219 = vunpack.c.l.b16 %v166
    %v220 = vunpack.c.h.b16 %v166
    %v221 = vunpack.c.l.b16 %v167
    %v222 = vunpack.c.h.b16 %v167
    %v223 = vunpack.c.l.b16 %v168
    %v224 = vunpack.c.h.b16 %v168
    %v225 = vunpack.c.l.b16 %v169
    %v226 = vunpack.c.h.b16 %v169
    %v227 = vunpack.c.l.b16 %v170
    %v228 = vunpack.c.h.b16 %v170
    %v229 = vunpack.c.l.b16 %v171
    %v230 = vunpack.c.h.b16 %v171
    %v231 = vunpack.c.l.b16 %v172
    %v232 = vunpack.c.h.b16 %v172
    %v233 = vpack.c.b16 %v203, %v201
    %v234 = vpack.c.b16 %v204, %v202
    %v235 = vpack.c.b16 %v207, %v205
    %v236 = vpack.c.b16 %v208, %v206
    %v237 = vpack.c.b16 %v211, %v209
    %v238 = vpack.c.b16 %v212, %v210
    %v239 = vpack.c.b16 %v215, %v213
    %v240 = vpack.c.b16 %v216, %v214
    %v241 = vpack.c.b16 %v219, %v217
    %v242 = vpack.c.b16 %v220, %v218
    %v243 = vpack.c.b16 %v223, %v221
    %v244 = vpack.c.b16 %v224, %v222
    %v245 = vpack.c.b16 %v227, %v225
    %v246 = vpack.c.b16 %v228, %v226
    %v247 = vpack.c.b16 %v231, %v229
    %v248 = vpack.c.b16 %v232, %v230
    %265 = vmatprep.subr.bf16.mxu0 %v234
    %266 = vmatpush1.bf16.msra.mxu0 %v233
    %267 = vmatprep.subr.bf16.mxu0 %v236
    %268 = vmatpush1.bf16.msra.mxu0 %v235
    %269 = vmatprep.subr.bf16.mxu0 %v238
    %270 = vmatpush1.bf16.msra.mxu0 %v237
    %271 = vmatprep.subr.bf16.mxu0 %v240
    %272 = vmatpush1.bf16.msra.mxu0 %v239
    %273 = vmatprep.subr.bf16.mxu0 %v242
    %274 = vmatpush1.bf16.msra.mxu0 %v241
    %275 = vmatprep.subr.bf16.mxu0 %v244
    %276 = vmatpush1.bf16.msra.mxu0 %v243
    %277 = vmatprep.subr.bf16.mxu0 %v246
    %278 = vmatpush1.bf16.msra.mxu0 %v245
    %279 = vmatprep.subr.bf16.mxu0 %v248
    %280 = vmatpush1.bf16.msra.mxu0 %v247
    %281 = vmatprep.subr.bf16.mxu0 0
    %282 = vmatpush1.bf16.msra.mxu0 0
    %283 = vmatprep.subr.bf16.mxu0 0
    %284 = vmatpush1.bf16.msra.mxu0 0
    %285 = vmatprep.subr.bf16.mxu0 0
    %286 = vmatpush1.bf16.msra.mxu0 0
    %287 = vmatprep.subr.bf16.mxu0 0
    %288 = vmatpush1.bf16.msra.mxu0 0
    %289 = vmatprep.subr.bf16.mxu0 0
    %290 = vmatpush1.bf16.msra.mxu0 0
    %291 = vmatprep.subr.bf16.mxu0 0
    %292 = vmatpush1.bf16.msra.mxu0 0
    %293 = vmatprep.subr.bf16.mxu0 0
    %294 = vmatpush1.bf16.msra.mxu0 0
    %295 = vmatprep.subr.bf16.mxu0 0
    %296 = vmatpush1.bf16.msra.mxu0 0
    %297 = vmatprep.mubr.bf16.mxu0 0
    %298 = vmatmul.mubr.bf16.gmra.mrb[0].mxu0 %v156
    %v299 = vpop.f32.mrb[0].mxu0
    %v300 = vadd.f32 %v178, %v299
    %v301 = vpop.f32.mrb[0].mxu0
    %v302 = vadd.f32 %v182, %v301
    %v303 = vpop.f32.mrb[0].mxu0
    %v304 = vadd.f32 %v178, %v303
    %v305 = vpop.f32.mrb[0].mxu0
    %v306 = vadd.f32 %v182, %v305
    %307 = vdwg.mxu0
    %v308 = vmax.f32 %v300, 0.0
    %v309 = vmax.f32 %v302, 0.0
    %v310 = vmax.f32 %v304, 0.0
    %v311 = vmax.f32 %v306, 0.0
    %v312 = vpack.c.bf16 %v310, %v308
    %v313 = vpack.c.bf16 %v311, %v309
    %v314 = vld [vmem:[%s5] sm:$0xff]
    %v315 = vld [vmem:[%s5 + $0x8] sm:$0xff]
    %v316 = vld [vmem:[%s5 + $0x10] sm:$0xff]
    %v317 = vld [vmem:[%s5 + $0x18] sm:$0xff]
    %v318 = vld [vmem:[%s5 + $0x20] sm:$0xff]
    %v319 = vld [vmem:[%s5 + $0x28] sm:$0xff]
    %v320 = vld [vmem:[%s5 + $0x30] sm:$0xff]
    %v321 = vld [vmem:[%s5 + $0x38] sm:$0xff]
    %v322 = vld [vmem:[%s5 + $0x40] sm:$0xff]
    %v323 = vld [vmem:[%s5 + $0x48] sm:$0xff]
    %v324 = vld [vmem:[%s5 + $0x50] sm:$0xff]
    %v325 = vld [vmem:[%s5 + $0x58] sm:$0xff]
    %v326 = vld [vmem:[%s5 + $0x60] sm:$0xff]
    %v327 = vld [vmem:[%s5 + $0x68] sm:$0xff]
    %v328 = vld [vmem:[%s5 + $0x70] sm:$0xff]
    %v329 = vld [vmem:[%s5 + $0x78] sm:$0xff]
    %v330 = vld [vmem:[%s5 + $0x80] sm:$0xff]
    %v331 = vld [vmem:[%s5 + $0x88] sm:$0xff]
    %v332 = vld [vmem:[%s5 + $0x90] sm:$0xff]
    %v333 = vld [vmem:[%s5 + $0x98] sm:$0xff]
    %v334 = vld [vmem:[%s5 + $0xa0] sm:$0xff]
    %v335 = vld [vmem:[%s5 + $0xa8] sm:$0xff]
    %v336 = vld [vmem:[%s5 + $0xb0] sm:$0xff]
    %v337 = vld [vmem:[%s5 + $0xb8] sm:$0xff]
    %v338 = vld [vmem:[%s5 + $0xc0] sm:$0xff]
    %v339 = vld [vmem:[%s5 + $0xc8] sm:$0xff]
    %v340 = vld [vmem:[%s5 + $0xd0] sm:$0xff]
    %v341 = vld [vmem:[%s5 + $0xd8] sm:$0xff]
    %v342 = vld [vmem:[%s5 + $0xe0] sm:$0xff]
    %v343 = vld [vmem:[%s5 + $0xe8] sm:$0xff]
    %v344 = vld [vmem:[%s5 + $0xf0] sm:$0xff]
    %v345 = vld [vmem:[%s5 + $0xf8] sm:$0xff]
    %v346 = vld [vmem:[%s5 + $0x100] sm:$0xff]
    %v347 = vld [vmem:[%s5 + $0x108] sm:$0xff]
    %v348 = vld [vmem:[%s5 + $0x110] sm:$0xff]
    %v349 = vld [vmem:[%s5 + $0x118] sm:$0xff]
    %v350 = vld [vmem:[%s5 + $0x120] sm:$0xff]
    %v351 = vld [vmem:[%s5 + $0x128] sm:$0xff]
    %v352 = vld [vmem:[%s5 + $0x130] sm:$0xff]
    %v353 = vld [vmem:[%s5 + $0x138] sm:$0xff]
    %v354 = vld [vmem:[%s5 + $0x140] sm:$0xff]
    %v355 = vld [vmem:[%s5 + $0x148] sm:$0xff]
    %v356 = vld [vmem:[%s5 + $0x150] sm:$0xff]
    %v357 = vld [vmem:[%s5 + $0x158] sm:$0xff]
    %v358 = vld [vmem:[%s5 + $0x160] sm:$0xff]
    %v359 = vld [vmem:[%s5 + $0x168] sm:$0xff]
    %v360 = vld [vmem:[%s5 + $0x170] sm:$0xff]
    %v361 = vld [vmem:[%s5 + $0x178] sm:$0xff]
    %v362 = vld [vmem:[%s5 + $0x180] sm:$0xff]
    %v363 = vld [vmem:[%s5 + $0x188] sm:$0xff]
    %v364 = vld [vmem:[%s5 + $0x190] sm:$0xff]
    %v365 = vld [vmem:[%s5 + $0x198] sm:$0xff]
    %v366 = vld [vmem:[%s5 + $0x1a0] sm:$0xff]
    %v367 = vld [vmem:[%s5 + $0x1a8] sm:$0xff]
    %v368 = vld [vmem:[%s5 + $0x1b0] sm:$0xff]
    %v369 = vld [vmem:[%s5 + $0x1b8] sm:$0xff]
    %v370 = vld [vmem:[%s5 + $0x1c0] sm:$0xff]
    %v371 = vld [vmem:[%s5 + $0x1c8] sm:$0xff]
    %v372 = vld [vmem:[%s5 + $0x1d0] sm:$0xff]
    %v373 = vld [vmem:[%s5 + $0x1d8] sm:$0xff]
    %v374 = vld [vmem:[%s5 + $0x1e0] sm:$0xff]
    %v375 = vld [vmem:[%s5 + $0x1e8] sm:$0xff]
    %v376 = vld [vmem:[%s5 + $0x1f0] sm:$0xff]
    %v377 = vld [vmem:[%s5 + $0x1f8] sm:$0xff]
    %v378 = vld [vmem:[%s6] sm:$0xf]
    %v380 = vlaneseq
    %v381 = vshrl.u32 %v380, 7
    %v382 = vsub.s32 0, %v381
    %v383 = vrot.slane %v378, %v382
    %v384 = vlaneseq
    %v385 = vshrl.u32 %v384, 7
    %v386 = vsub.s32 1, %v385
    %v387 = vrot.slane %v378, %v386
    %v388 = vlaneseq
    %v389 = vshrl.u32 %v388, 7
    %v390 = vsub.s32 2, %v389
    %v391 = vrot.slane %v378, %v390
    %v392 = vlaneseq
    %v393 = vshrl.u32 %v392, 7
    %v394 = vsub.s32 3, %v393
    %v395 = vrot.slane %v378, %v394
    %v464 = vunpack.c.l.b16 %v314
    %v465 = vunpack.c.h.b16 %v314
    %v466 = vunpack.c.l.b16 %v315
    %v467 = vunpack.c.h.b16 %v315
    %v468 = vunpack.c.l.b16 %v316
    %v469 = vunpack.c.h.b16 %v316
    %v470 = vunpack.c.l.b16 %v317
    %v471 = vunpack.c.h.b16 %v317
    %v472 = vunpack.c.l.b16 %v318
    %v473 = vunpack.c.h.b16 %v318
    %v474 = vunpack.c.l.b16 %v319
    %v475 = vunpack.c.h.b16 %v319
    %v476 = vunpack.c.l.b16 %v320
    %v477 = vunpack.c.h.b16 %v320
    %v478 = vunpack.c.l.b16 %v321
    %v479 = vunpack.c.h.b16 %v321
    %v480 = vunpack.c.l.b16 %v322
    %v481 = vunpack.c.h.b16 %v322
    %v482 = vunpack.c.l.b16 %v323
    %v483 = vunpack.c.h.b16 %v323
    %v484 = vunpack.c.l.b16 %v324
    %v485 = vunpack.c.h.b16 %v324
    %v486 = vunpack.c.l.b16 %v325
    %v487 = vunpack.c.h.b16 %v325
    %v488 = vunpack.c.l.b16 %v326
    %v489 = vunpack.c.h.b16 %v326
    %v490 = vunpack.c.l.b16 %v327
    %v491 = vunpack.c.h.b16 %v327
    %v492 = vunpack.c.l.b16 %v328
    %v493 = vunpack.c.h.b16 %v328
    %v494 = vunpack.c.l.b16 %v329
    %v495 = vunpack.c.h.b16 %v329
    %v496 = vunpack.c.l.b16 %v330
    %v497 = vunpack.c.h.b16 %v330
    %v498 = vunpack.c.l.b16 %v331
    %v499 = vunpack.c.h.b16 %v331
    %v500 = vunpack.c.l.b16 %v332
    %v501 = vunpack.c.h.b16 %v332
    %v502 = vunpack.c.l.b16 %v333
    %v503 = vunpack.c.h.b16 %v333
    %v504 = vunpack.c.l.b16 %v334
    %v505 = vunpack.c.h.b16 %v334
    %v506 = vunpack.c.l.b16 %v335
    %v507 = vunpack.c.h.b16 %v335
    %v508 = vunpack.c.l.b16 %v336
    %v509 = vunpack.c.h.b16 %v336
    %v510 = vunpack.c.l.b16 %v337
    %v511 = vunpack.c.h.b16 %v337
    %v512 = vunpack.c.l.b16 %v338
    %v513 = vunpack.c.h.b16 %v338
    %v514 = vunpack.c.l.b16 %v339
    %v515 = vunpack.c.h.b16 %v339
    %v516 = vunpack.c.l.b16 %v340
    %v517 = vunpack.c.h.b16 %v340
    %v518 = vunpack.c.l.b16 %v341
    %v519 = vunpack.c.h.b16 %v341
    %v520 = vunpack.c.l.b16 %v342
    %v521 = vunpack.c.h.b16 %v342
    %v522 = vunpack.c.l.b16 %v343
    %v523 = vunpack.c.h.b16 %v343
    %v524 = vunpack.c.l.b16 %v344
    %v525 = vunpack.c.h.b16 %v344
    %v526 = vunpack.c.l.b16 %v345
    %v527 = vunpack.c.h.b16 %v345
    %v528 = vunpack.c.l.b16 %v346
    %v529 = vunpack.c.h.b16 %v346
    %v530 = vunpack.c.l.b16 %v347
    %v531 = vunpack.c.h.b16 %v347
    %v532 = vunpack.c.l.b16 %v348
    %v533 = vunpack.c.h.b16 %v348
    %v534 = vunpack.c.l.b16 %v349
    %v535 = vunpack.c.h.b16 %v349
    %v536 = vunpack.c.l.b16 %v350
    %v537 = vunpack.c.h.b16 %v350
    %v538 = vunpack.c.l.b16 %v351
    %v539 = vunpack.c.h.b16 %v351
    %v540 = vunpack.c.l.b16 %v352
    %v541 = vunpack.c.h.b16 %v352
    %v542 = vunpack.c.l.b16 %v353
    %v543 = vunpack.c.h.b16 %v353
    %v544 = vunpack.c.l.b16 %v354
    %v545 = vunpack.c.h.b16 %v354
    %v546 = vunpack.c.l.b16 %v355
    %v547 = vunpack.c.h.b16 %v355
    %v548 = vunpack.c.l.b16 %v356
    %v549 = vunpack.c.h.b16 %v356
    %v550 = vunpack.c.l.b16 %v357
    %v551 = vunpack.c.h.b16 %v357
    %v552 = vunpack.c.l.b16 %v358
    %v553 = vunpack.c.h.b16 %v358
    %v554 = vunpack.c.l.b16 %v359
    %v555 = vunpack.c.h.b16 %v359
    %v556 = vunpack.c.l.b16 %v360
    %v557 = vunpack.c.h.b16 %v360
    %v558 = vunpack.c.l.b16 %v361
    %v559 = vunpack.c.h.b16 %v361
    %v560 = vunpack.c.l.b16 %v362
    %v561 = vunpack.c.h.b16 %v362
    %v562 = vunpack.c.l.b16 %v363
    %v563 = vunpack.c.h.b16 %v363
    %v564 = vunpack.c.l.b16 %v364
    %v565 = vunpack.c.h.b16 %v364
    %v566 = vunpack.c.l.b16 %v365
    %v567 = vunpack.c.h.b16 %v365
    %v568 = vunpack.c.l.b16 %v366
    %v569 = vunpack.c.h.b16 %v366
    %v570 = vunpack.c.l.b16 %v367
    %v571 = vunpack.c.h.b16 %v367
    %v572 = vunpack.c.l.b16 %v368
    %v573 = vunpack.c.h.b16 %v368
    %v574 = vunpack.c.l.b16 %v369
    %v575 = vunpack.c.h.b16 %v369
    %v576 = vunpack.c.l.b16 %v370
    %v577 = vunpack.c.h.b16 %v370
    %v578 = vunpack.c.l.b16 %v371
    %v579 = vunpack.c.h.b16 %v371
    %v580 = vunpack.c.l.b16 %v372
    %v581 = vunpack.c.h.b16 %v372
    %v582 = vunpack.c.l.b16 %v373
    %v583 = vunpack.c.h.b16 %v373
    %v584 = vunpack.c.l.b16 %v374
    %v585 = vunpack.c.h.b16 %v374
    %v586 = vunpack.c.l.b16 %v375
    %v587 = vunpack.c.h.b16 %v375
    %v588 = vunpack.c.l.b16 %v376
    %v589 = vunpack.c.h.b16 %v376
    %v590 = vunpack.c.l.b16 %v377
    %v591 = vunpack.c.h.b16 %v377
    %v592 = vpack.c.b16 %v468, %v464
    %v593 = vpack.c.b16 %v469, %v465
    %v594 = vpack.c.b16 %v470, %v466
    %v595 = vpack.c.b16 %v471, %v467
    %v596 = vpack.c.b16 %v476, %v472
    %v597 = vpack.c.b16 %v477, %v473
    %v598 = vpack.c.b16 %v478, %v474
    %v599 = vpack.c.b16 %v479, %v475
    %v600 = vpack.c.b16 %v484, %v480
    %v601 = vpack.c.b16 %v485, %v481
    %v602 = vpack.c.b16 %v486, %v482
    %v603 = vpack.c.b16 %v487, %v483
    %v604 = vpack.c.b16 %v492, %v488
    %v605 = vpack.c.b16 %v493, %v489
    %v606 = vpack.c.b16 %v494, %v490
    %v607 = vpack.c.b16 %v495, %v491
    %v608 = vpack.c.b16 %v500, %v496
    %v609 = vpack.c.b16 %v501, %v497
    %v610 = vpack.c.b16 %v502, %v498
    %v611 = vpack.c.b16 %v503, %v499
    %v612 = vpack.c.b16 %v508, %v504
    %v613 = vpack.c.b16 %v509, %v505
    %v614 = vpack.c.b16 %v510, %v506
    %v615 = vpack.c.b16 %v511, %v507
    %v616 = vpack.c.b16 %v516, %v512
    %v617 = vpack.c.b16 %v517, %v513
    %v618 = vpack.c.b16 %v518, %v514
    %v619 = vpack.c.b16 %v519, %v515
    %v620 = vpack.c.b16 %v524, %v520
    %v621 = vpack.c.b16 %v525, %v521
    %v622 = vpack.c.b16 %v526, %v522
    %v623 = vpack.c.b16 %v527, %v523
    %v624 = vpack.c.b16 %v532, %v528
    %v625 = vpack.c.b16 %v533, %v529
    %v626 = vpack.c.b16 %v534, %v530
    %v627 = vpack.c.b16 %v535, %v531
    %v628 = vpack.c.b16 %v540, %v536
    %v629 = vpack.c.b16 %v541, %v537
    %v630 = vpack.c.b16 %v542, %v538
    %v631 = vpack.c.b16 %v543, %v539
    %v632 = vpack.c.b16 %v548, %v544
    %v633 = vpack.c.b16 %v549, %v545
    %v634 = vpack.c.b16 %v550, %v546
    %v635 = vpack.c.b16 %v551, %v547
    %v636 = vpack.c.b16 %v556, %v552
    %v637 = vpack.c.b16 %v557, %v553
    %v638 = vpack.c.b16 %v558, %v554
    %v639 = vpack.c.b16 %v559, %v555
    %v640 = vpack.c.b16 %v564, %v560
    %v641 = vpack.c.b16 %v565, %v561
    %v642 = vpack.c.b16 %v566, %v562
    %v643 = vpack.c.b16 %v567, %v563
    %v644 = vpack.c.b16 %v572, %v568
    %v645 = vpack.c.b16 %v573, %v569
    %v646 = vpack.c.b16 %v574, %v570
    %v647 = vpack.c.b16 %v575, %v571
    %v648 = vpack.c.b16 %v580, %v576
    %v649 = vpack.c.b16 %v581, %v577
    %v650 = vpack.c.b16 %v582, %v578
    %v651 = vpack.c.b16 %v583, %v579
    %v652 = vpack.c.b16 %v588, %v584
    %v653 = vpack.c.b16 %v589, %v585
    %v654 = vpack.c.b16 %v590, %v586
    %v655 = vpack.c.b16 %v591, %v587
    %720 = vmatprep.subr.bf16.mxu0 %v593
    %721 = vmatpush1.bf16.msra.mxu0 %v592
    %722 = vmatprep.subr.bf16.mxu0 %v597
    %723 = vmatpush1.bf16.msra.mxu0 %v596
    %724 = vmatprep.subr.bf16.mxu0 %v601
    %725 = vmatpush1.bf16.msra.mxu0 %v600
    %726 = vmatprep.subr.bf16.mxu0 %v605
    %727 = vmatpush1.bf16.msra.mxu0 %v604
    %728 = vmatprep.subr.bf16.mxu0 %v609
    %729 = vmatpush1.bf16.msra.mxu0 %v608
    %730 = vmatprep.subr.bf16.mxu0 %v613
    %731 = vmatpush1.bf16.msra.mxu0 %v612
    %732 = vmatprep.subr.bf16.mxu0 %v617
    %733 = vmatpush1.bf16.msra.mxu0 %v616
    %734 = vmatprep.subr.bf16.mxu0 %v621
    %735 = vmatpush1.bf16.msra.mxu0 %v620
    %736 = vmatprep.subr.bf16.mxu0 %v625
    %737 = vmatpush1.bf16.msra.mxu0 %v624
    %738 = vmatprep.subr.bf16.mxu0 %v629
    %739 = vmatpush1.bf16.msra.mxu0 %v628
    %740 = vmatprep.subr.bf16.mxu0 %v633
    %741 = vmatpush1.bf16.msra.mxu0 %v632
    %742 = vmatprep.subr.bf16.mxu0 %v637
    %743 = vmatpush1.bf16.msra.mxu0 %v636
    %744 = vmatprep.subr.bf16.mxu0 %v641
    %745 = vmatpush1.bf16.msra.mxu0 %v640
    %746 = vmatprep.subr.bf16.mxu0 %v645
    %747 = vmatpush1.bf16.msra.mxu0 %v644
    %748 = vmatprep.subr.bf16.mxu0 %v649
    %749 = vmatpush1.bf16.msra.mxu0 %v648
    %750 = vmatprep.subr.bf16.mxu0 %v653
    %751 = vmatpush1.bf16.msra.mxu0 %v652
    %752 = vmatprep.mubr.bf16.mxu0 %v313
    %753 = vmatmul.mubr.bf16.gmra.mrb[0].mxu0 %v312
    %v754 = vpop.f32.mrb[0].mxu0
    %v755 = vadd.f32 %v383, %v754
    %v756 = vpop.f32.mrb[0].mxu0
    %v757 = vadd.f32 %v387, %v756
    %v758 = vpop.f32.mrb[0].mxu0
    %v759 = vadd.f32 %v383, %v758
    %v760 = vpop.f32.mrb[0].mxu0
    %v761 = vadd.f32 %v387, %v760
    %762 = vdwg.mxu0
    %763 = vmatprep.subr.bf16.mxu0 %v595
    %764 = vmatpush1.bf16.msra.mxu0 %v594
    %765 = vmatprep.subr.bf16.mxu0 %v599
    %766 = vmatpush1.bf16.msra.mxu0 %v598
    %767 = vmatprep.subr.bf16.mxu0 %v603
    %768 = vmatpush1.bf16.msra.mxu0 %v602
    %769 = vmatprep.subr.bf16.mxu0 %v607
    %770 = vmatpush1.bf16.msra.mxu0 %v606
    %771 = vmatprep.subr.bf16.mxu0 %v611
    %772 = vmatpush1.bf16.msra.mxu0 %v610
    %773 = vmatprep.subr.bf16.mxu0 %v615
    %774 = vmatpush1.bf16.msra.mxu0 %v614
    %775 = vmatprep.subr.bf16.mxu0 %v619
    %776 = vmatpush1.bf16.msra.mxu0 %v618
    %777 = vmatprep.subr.bf16.mxu0 %v623
    %778 = vmatpush1.bf16.msra.mxu0 %v622
    %779 = vmatprep.subr.bf16.mxu0 %v627
    %780 = vmatpush1.bf16.msra.mxu0 %v626
    %781 = vmatprep.subr.bf16.mxu0 %v631
    %782 = vmatpush1.bf16.msra.mxu0 %v630
    %783 = vmatprep.subr.bf16.mxu0 %v635
    %784 = vmatpush1.bf16.msra.mxu0 %v634
    %785 = vmatprep.subr.bf16.mxu0 %v639
    %786 = vmatpush1.bf16.msra.mxu0 %v638
    %787 = vmatprep.subr.bf16.mxu0 %v643
    %788 = vmatpush1.bf16.msra.mxu0 %v642
    %789 = vmatprep.subr.bf16.mxu0 %v647
    %790 = vmatpush1.bf16.msra.mxu0 %v646
    %791 = vmatprep.subr.bf16.mxu0 %v651
    %792 = vmatpush1.bf16.msra.mxu0 %v650
    %793 = vmatprep.subr.bf16.mxu0 %v655
    %794 = vmatpush1.bf16.msra.mxu0 %v654
    %795 = vmatprep.mubr.bf16.mxu0 %v313
    %796 = vmatmul.mubr.bf16.gmra.mrb[0].mxu0 %v312
    %v797 = vpop.f32.mrb[0].mxu0
    %v798 = vadd.f32 %v391, %v797
    %v799 = vpop.f32.mrb[0].mxu0
    %v800 = vadd.f32 %v395, %v799
    %v801 = vpop.f32.mrb[0].mxu0
    %v802 = vadd.f32 %v391, %v801
    %v803 = vpop.f32.mrb[0].mxu0
    %v804 = vadd.f32 %v395, %v803
    %805 = vdwg.mxu0
    %v806 = vmax.f32 %v755, 0.0
    %v807 = vmax.f32 %v757, 0.0
    %v808 = vmax.f32 %v798, 0.0
    %v809 = vmax.f32 %v800, 0.0
    %v810 = vmax.f32 %v759, 0.0
    %v811 = vmax.f32 %v761, 0.0
    %v812 = vmax.f32 %v802, 0.0
    %v813 = vmax.f32 %v804, 0.0
    %v814 = vpack.c.bf16 %v810, %v806
    %v815 = vpack.c.bf16 %v811, %v807
    %v816 = vpack.c.bf16 %v812, %v808
    %v817 = vpack.c.bf16 %v813, %v809
    %v818 = vld [vmem:[%s7] sm:$0xff]
    %v819 = vld [vmem:[%s7 + $0x8] sm:$0xff]
    %v820 = vld [vmem:[%s7 + $0x10] sm:$0xff]
    %v821 = vld [vmem:[%s7 + $0x18] sm:$0xf]
    %v822 = vld [vmem:[%s7 + $0x1c] sm:$0xff]
    %v823 = vld [vmem:[%s7 + $0x24] sm:$0xff]
    %v824 = vld [vmem:[%s7 + $0x2c] sm:$0xff]
    %v825 = vld [vmem:[%s7 + $0x34] sm:$0xf]
    %v826 = vld [vmem:[%s7 + $0x38] sm:$0xff]
    %v827 = vld [vmem:[%s7 + $0x40] sm:$0xff]
    %v828 = vld [vmem:[%s7 + $0x48] sm:$0xff]
    %v829 = vld [vmem:[%s7 + $0x50] sm:$0xf]
    %v830 = vld [vmem:[%s7 + $0x54] sm:$0xff]
    %v831 = vld [vmem:[%s7 + $0x5c] sm:$0xff]
    %v832 = vld [vmem:[%s7 + $0x64] sm:$0xff]
    %v833 = vld [vmem:[%s7 + $0x6c] sm:$0xf]
    %v834 = vld [vmem:[%s7 + $0x70] sm:$0xff]
    %v835 = vld [vmem:[%s7 + $0x78] sm:$0xff]
    %v836 = vld [vmem:[%s7 + $0x80] sm:$0xff]
    %v837 = vld [vmem:[%s7 + $0x88] sm:$0xf]
    %v838 = vld [vmem:[%s7 + $0x8c] sm:$0xff]
    %v839 = vld [vmem:[%s7 + $0x94] sm:$0xff]
    %v840 = vld [vmem:[%s7 + $0x9c] sm:$0xff]
    %v841 = vld [vmem:[%s7 + $0xa4] sm:$0xf]
    %v842 = vld [vmem:[%s7 + $0xa8] sm:$0xff]
    %v843 = vld [vmem:[%s7 + $0xb0] sm:$0xff]
    %v844 = vld [vmem:[%s7 + $0xb8] sm:$0xff]
    %v845 = vld [vmem:[%s7 + $0xc0] sm:$0xf]
    %v846 = vld [vmem:[%s7 + $0xc4] sm:$0xff]
    %v847 = vld [vmem:[%s7 + $0xcc] sm:$0xff]
    %v848 = vld [vmem:[%s7 + $0xd4] sm:$0xff]
    %v849 = vld [vmem:[%s7 + $0xdc] sm:$0xf]
    %v850 = vld [vmem:[%s7 + $0xe0] sm:$0xff]
    %v851 = vld [vmem:[%s7 + $0xe8] sm:$0xff]
    %v852 = vld [vmem:[%s7 + $0xf0] sm:$0xff]
    %v853 = vld [vmem:[%s7 + $0xf8] sm:$0xf]
    %v854 = vld [vmem:[%s7 + $0xfc] sm:$0xff]
    %v855 = vld [vmem:[%s7 + $0x104] sm:$0xff]
    %v856 = vld [vmem:[%s7 + $0x10c] sm:$0xff]
    %v857 = vld [vmem:[%s7 + $0x114] sm:$0xf]
    %v858 = vld [vmem:[%s7 + $0x118] sm:$0xff]
    %v859 = vld [vmem:[%s7 + $0x120] sm:$0xff]
    %v860 = vld [vmem:[%s7 + $0x128] sm:$0xff]
    %v861 = vld [vmem:[%s7 + $0x130] sm:$0xf]
    %v862 = vld [vmem:[%s7 + $0x134] sm:$0xff]
    %v863 = vld [vmem:[%s7 + $0x13c] sm:$0xff]
    %v864 = vld [vmem:[%s7 + $0x144] sm:$0xff]
    %v865 = vld [vmem:[%s7 + $0x14c] sm:$0xf]
    %v866 = vld [vmem:[%s7 + $0x150] sm:$0xff]
    %v867 = vld [vmem:[%s7 + $0x158] sm:$0xff]
    %v868 = vld [vmem:[%s7 + $0x160] sm:$0xff]
    %v869 = vld [vmem:[%s7 + $0x168] sm:$0xf]
    %v870 = vld [vmem:[%s7 + $0x16c] sm:$0xff]
    %v871 = vld [vmem:[%s7 + $0x174] sm:$0xff]
    %v872 = vld [vmem:[%s7 + $0x17c] sm:$0xff]
    %v873 = vld [vmem:[%s7 + $0x184] sm:$0xf]
    %v874 = vld [vmem:[%s7 + $0x188] sm:$0xff]
    %v875 = vld [vmem:[%s7 + $0x190] sm:$0xff]
    %v876 = vld [vmem:[%s7 + $0x198] sm:$0xff]
    %v877 = vld [vmem:[%s7 + $0x1a0] sm:$0xf]
    %v878 = vld [vmem:[%s7 + $0x1a4] sm:$0xff]
    %v879 = vld [vmem:[%s7 + $0x1ac] sm:$0xff]
    %v880 = vld [vmem:[%s7 + $0x1b4] sm:$0xff]
    %v881 = vld [vmem:[%s7 + $0x1bc] sm:$0xf]
    %v882 = vld [vmem:[%s7 + $0x1c0] sm:$0xff]
    %v883 = vld [vmem:[%s7 + $0x1c8] sm:$0xff]
    %v884 = vld [vmem:[%s7 + $0x1d0] sm:$0xff]
    %v885 = vld [vmem:[%s7 + $0x1d8] sm:$0xf]
    %v886 = vld [vmem:[%s7 + $0x1dc] sm:$0xff]
    %v887 = vld [vmem:[%s7 + $0x1e4] sm:$0xff]
    %v888 = vld [vmem:[%s7 + $0x1ec] sm:$0xff]
    %v889 = vld [vmem:[%s7 + $0x1f4] sm:$0xf]
    %v890 = vld [vmem:[%s7 + $0x1f8] sm:$0xff]
    %v891 = vld [vmem:[%s7 + $0x200] sm:$0xff]
    %v892 = vld [vmem:[%s7 + $0x208] sm:$0xff]
    %v893 = vld [vmem:[%s7 + $0x210] sm:$0xf]
    %v894 = vld [vmem:[%s7 + $0x214] sm:$0xff]
    %v895 = vld [vmem:[%s7 + $0x21c] sm:$0xff]
    %v896 = vld [vmem:[%s7 + $0x224] sm:$0xff]
    %v897 = vld [vmem:[%s7 + $0x22c] sm:$0xf]
    %v898 = vld [vmem:[%s7 + $0x230] sm:$0xff]
    %v899 = vld [vmem:[%s7 + $0x238] sm:$0xff]
    %v900 = vld [vmem:[%s7 + $0x240] sm:$0xff]
    %v901 = vld [vmem:[%s7 + $0x248] sm:$0xf]
    %v902 = vld [vmem:[%s7 + $0x24c] sm:$0xff]
    %v903 = vld [vmem:[%s7 + $0x254] sm:$0xff]
    %v904 = vld [vmem:[%s7 + $0x25c] sm:$0xff]
    %v905 = vld [vmem:[%s7 + $0x264] sm:$0xf]
    %v906 = vld [vmem:[%s7 + $0x268] sm:$0xff]
    %v907 = vld [vmem:[%s7 + $0x270] sm:$0xff]
    %v908 = vld [vmem:[%s7 + $0x278] sm:$0xff]
    %v909 = vld [vmem:[%s7 + $0x280] sm:$0xf]
    %v910 = vld [vmem:[%s7 + $0x284] sm:$0xff]
    %v911 = vld [vmem:[%s7 + $0x28c] sm:$0xff]
    %v912 = vld [vmem:[%s7 + $0x294] sm:$0xff]
    %v913 = vld [vmem:[%s7 + $0x29c] sm:$0xf]
    %v914 = vld [vmem:[%s7 + $0x2a0] sm:$0xff]
    %v915 = vld [vmem:[%s7 + $0x2a8] sm:$0xff]
    %v916 = vld [vmem:[%s7 + $0x2b0] sm:$0xff]
    %v917 = vld [vmem:[%s7 + $0x2b8] sm:$0xf]
    %v918 = vld [vmem:[%s7 + $0x2bc] sm:$0xff]
    %v919 = vld [vmem:[%s7 + $0x2c4] sm:$0xff]
    %v920 = vld [vmem:[%s7 + $0x2cc] sm:$0xff]
    %v921 = vld [vmem:[%s7 + $0x2d4] sm:$0xf]
    %v922 = vld [vmem:[%s7 + $0x2d8] sm:$0xff]
    %v923 = vld [vmem:[%s7 + $0x2e0] sm:$0xff]
    %v924 = vld [vmem:[%s7 + $0x2e8] sm:$0xff]
    %v925 = vld [vmem:[%s7 + $0x2f0] sm:$0xf]
    %v926 = vld [vmem:[%s7 + $0x2f4] sm:$0xff]
    %v927 = vld [vmem:[%s7 + $0x2fc] sm:$0xff]
    %v928 = vld [vmem:[%s7 + $0x304] sm:$0xff]
    %v929 = vld [vmem:[%s7 + $0x30c] sm:$0xf]
    %v930 = vld [vmem:[%s7 + $0x310] sm:$0xff]
    %v931 = vld [vmem:[%s7 + $0x318] sm:$0xff]
    %v932 = vld [vmem:[%s7 + $0x320] sm:$0xff]
    %v933 = vld [vmem:[%s7 + $0x328] sm:$0xf]
    %v934 = vld [vmem:[%s7 + $0x32c] sm:$0xff]
    %v935 = vld [vmem:[%s7 + $0x334] sm:$0xff]
    %v936 = vld [vmem:[%s7 + $0x33c] sm:$0xff]
    %v937 = vld [vmem:[%s7 + $0x344] sm:$0xf]
    %v938 = vld [vmem:[%s7 + $0x348] sm:$0xff]
    %v939 = vld [vmem:[%s7 + $0x350] sm:$0xff]
    %v940 = vld [vmem:[%s7 + $0x358] sm:$0xff]
    %v941 = vld [vmem:[%s7 + $0x360] sm:$0xf]
    %v942 = vld [vmem:[%s7 + $0x364] sm:$0xff]
    %v943 = vld [vmem:[%s7 + $0x36c] sm:$0xff]
    %v944 = vld [vmem:[%s7 + $0x374] sm:$0xff]
    %v945 = vld [vmem:[%s7 + $0x37c] sm:$0xf]
    %v946 = vld [vmem:[%s7 + $0x380] sm:$0xff]
    %v947 = vld [vmem:[%s7 + $0x388] sm:$0xff]
    %v948 = vld [vmem:[%s7 + $0x390] sm:$0xff]
    %v949 = vld [vmem:[%s7 + $0x398] sm:$0xf]
    %v950 = vld [vmem:[%s7 + $0x39c] sm:$0xff]
    %v951 = vld [vmem:[%s7 + $0x3a4] sm:$0xff]
    %v952 = vld [vmem:[%s7 + $0x3ac] sm:$0xff]
    %v953 = vld [vmem:[%s7 + $0x3b4] sm:$0xf]
    %v954 = vld [vmem:[%s7 + $0x3b8] sm:$0xff]
    %v955 = vld [vmem:[%s7 + $0x3c0] sm:$0xff]
    %v956 = vld [vmem:[%s7 + $0x3c8] sm:$0xff]
    %v957 = vld [vmem:[%s7 + $0x3d0] sm:$0xf]
    %v958 = vld [vmem:[%s7 + $0x3d4] sm:$0xff]
    %v959 = vld [vmem:[%s7 + $0x3dc] sm:$0xff]
    %v960 = vld [vmem:[%s7 + $0x3e4] sm:$0xff]
    %v961 = vld [vmem:[%s7 + $0x3ec] sm:$0xf]
    %v962 = vld [vmem:[%s7 + $0x3f0] sm:$0xff]
    %v963 = vld [vmem:[%s7 + $0x3f8] sm:$0xff]
    %v964 = vld [vmem:[%s7 + $0x400] sm:$0xff]
    %v965 = vld [vmem:[%s7 + $0x408] sm:$0xf]
    %v966 = vld [vmem:[%s7 + $0x40c] sm:$0xff]
    %v967 = vld [vmem:[%s7 + $0x414] sm:$0xff]
    %v968 = vld [vmem:[%s7 + $0x41c] sm:$0xff]
    %v969 = vld [vmem:[%s7 + $0x424] sm:$0xf]
    %v970 = vld [vmem:[%s7 + $0x428] sm:$0xff]
    %v971 = vld [vmem:[%s7 + $0x430] sm:$0xff]
    %v972 = vld [vmem:[%s7 + $0x438] sm:$0xff]
    %v973 = vld [vmem:[%s7 + $0x440] sm:$0xf]
    %v974 = vld [vmem:[%s7 + $0x444] sm:$0xff]
    %v975 = vld [vmem:[%s7 + $0x44c] sm:$0xff]
    %v976 = vld [vmem:[%s7 + $0x454] sm:$0xff]
    %v977 = vld [vmem:[%s7 + $0x45c] sm:$0xf]
    %v978 = vld [vmem:[%s7 + $0x460] sm:$0xff]
    %v979 = vld [vmem:[%s7 + $0x468] sm:$0xff]
    %v980 = vld [vmem:[%s7 + $0x470] sm:$0xff]
    %v981 = vld [vmem:[%s7 + $0x478] sm:$0xf]
    %v982 = vld [vmem:[%s7 + $0x47c] sm:$0xff]
    %v983 = vld [vmem:[%s7 + $0x484] sm:$0xff]
    %v984 = vld [vmem:[%s7 + $0x48c] sm:$0xff]
    %v985 = vld [vmem:[%s7 + $0x494] sm:$0xf]
    %v986 = vld [vmem:[%s7 + $0x498] sm:$0xff]
    %v987 = vld [vmem:[%s7 + $0x4a0] sm:$0xff]
    %v988 = vld [vmem:[%s7 + $0x4a8] sm:$0xff]
    %v989 = vld [vmem:[%s7 + $0x4b0] sm:$0xf]
    %v990 = vld [vmem:[%s7 + $0x4b4] sm:$0xff]
    %v991 = vld [vmem:[%s7 + $0x4bc] sm:$0xff]
    %v992 = vld [vmem:[%s7 + $0x4c4] sm:$0xff]
    %v993 = vld [vmem:[%s7 + $0x4cc] sm:$0xf]
    %v994 = vld [vmem:[%s7 + $0x4d0] sm:$0xff]
    %v995 = vld [vmem:[%s7 + $0x4d8] sm:$0xff]
    %v996 = vld [vmem:[%s7 + $0x4e0] sm:$0xff]
    %v997 = vld [vmem:[%s7 + $0x4e8] sm:$0xf]
    %v998 = vld [vmem:[%s7 + $0x4ec] sm:$0xff]
    %v999 = vld [vmem:[%s7 + $0x4f4] sm:$0xff]
    %v1000 = vld [vmem:[%s7 + $0x4fc] sm:$0xff]
    %v1001 = vld [vmem:[%s7 + $0x504] sm:$0xf]
    %v1002 = vld [vmem:[%s7 + $0x508] sm:$0xff]
    %v1003 = vld [vmem:[%s7 + $0x510] sm:$0xff]
    %v1004 = vld [vmem:[%s7 + $0x518] sm:$0xff]
    %v1005 = vld [vmem:[%s7 + $0x520] sm:$0xf]
    %v1006 = vld [vmem:[%s7 + $0x524] sm:$0xff]
    %v1007 = vld [vmem:[%s7 + $0x52c] sm:$0xff]
    %v1008 = vld [vmem:[%s7 + $0x534] sm:$0xff]
    %v1009 = vld [vmem:[%s7 + $0x53c] sm:$0xf]
    %v1010 = vld [vmem:[%s7 + $0x540] sm:$0xff]
    %v1011 = vld [vmem:[%s7 + $0x548] sm:$0xff]
    %v1012 = vld [vmem:[%s7 + $0x550] sm:$0xff]
    %v1013 = vld [vmem:[%s7 + $0x558] sm:$0xf]
    %v1014 = vld [vmem:[%s7 + $0x55c] sm:$0xff]
    %v1015 = vld [vmem:[%s7 + $0x564] sm:$0xff]
    %v1016 = vld [vmem:[%s7 + $0x56c] sm:$0xff]
    %v1017 = vld [vmem:[%s7 + $0x574] sm:$0xf]
    %v1018 = vld [vmem:[%s7 + $0x578] sm:$0xff]
    %v1019 = vld [vmem:[%s7 + $0x580] sm:$0xff]
    %v1020 = vld [vmem:[%s7 + $0x588] sm:$0xff]
    %v1021 = vld [vmem:[%s7 + $0x590] sm:$0xf]
    %v1022 = vld [vmem:[%s7 + $0x594] sm:$0xff]
    %v1023 = vld [vmem:[%s7 + $0x59c] sm:$0xff]
    %v1024 = vld [vmem:[%s7 + $0x5a4] sm:$0xff]
    %v1025 = vld [vmem:[%s7 + $0x5ac] sm:$0xf]
    %v1026 = vld [vmem:[%s7 + $0x5b0] sm:$0xff]
    %v1027 = vld [vmem:[%s7 + $0x5b8] sm:$0xff]
    %v1028 = vld [vmem:[%s7 + $0x5c0] sm:$0xff]
    %v1029 = vld [vmem:[%s7 + $0x5c8] sm:$0xf]
    %v1030 = vld [vmem:[%s7 + $0x5cc] sm:$0xff]
    %v1031 = vld [vmem:[%s7 + $0x5d4] sm:$0xff]
    %v1032 = vld [vmem:[%s7 + $0x5dc] sm:$0xff]
    %v1033 = vld [vmem:[%s7 + $0x5e4] sm:$0xf]
    %v1034 = vld [vmem:[%s7 + $0x5e8] sm:$0xff]
    %v1035 = vld [vmem:[%s7 + $0x5f0] sm:$0xff]
    %v1036 = vld [vmem:[%s7 + $0x5f8] sm:$0xff]
    %v1037 = vld [vmem:[%s7 + $0x600] sm:$0xf]
    %v1038 = vld [vmem:[%s7 + $0x604] sm:$0xff]
    %v1039 = vld [vmem:[%s7 + $0x60c] sm:$0xff]
    %v1040 = vld [vmem:[%s7 + $0x614] sm:$0xff]
    %v1041 = vld [vmem:[%s7 + $0x61c] sm:$0xf]
    %v1042 = vld [vmem:[%s7 + $0x620] sm:$0xff]
    %v1043 = vld [vmem:[%s7 + $0x628] sm:$0xff]
    %v1044 = vld [vmem:[%s7 + $0x630] sm:$0xff]
    %v1045 = vld [vmem:[%s7 + $0x638] sm:$0xf]
    %v1046 = vld [vmem:[%s7 + $0x63c] sm:$0xff]
    %v1047 = vld [vmem:[%s7 + $0x644] sm:$0xff]
    %v1048 = vld [vmem:[%s7 + $0x64c] sm:$0xff]
    %v1049 = vld [vmem:[%s7 + $0x654] sm:$0xf]
    %v1050 = vld [vmem:[%s7 + $0x658] sm:$0xff]
    %v1051 = vld [vmem:[%s7 + $0x660] sm:$0xff]
    %v1052 = vld [vmem:[%s7 + $0x668] sm:$0xff]
    %v1053 = vld [vmem:[%s7 + $0x670] sm:$0xf]
    %v1054 = vld [vmem:[%s7 + $0x674] sm:$0xff]
    %v1055 = vld [vmem:[%s7 + $0x67c] sm:$0xff]
    %v1056 = vld [vmem:[%s7 + $0x684] sm:$0xff]
    %v1057 = vld [vmem:[%s7 + $0x68c] sm:$0xf]
    %v1058 = vld [vmem:[%s7 + $0x690] sm:$0xff]
    %v1059 = vld [vmem:[%s7 + $0x698] sm:$0xff]
    %v1060 = vld [vmem:[%s7 + $0x6a0] sm:$0xff]
    %v1061 = vld [vmem:[%s7 + $0x6a8] sm:$0xf]
    %v1062 = vld [vmem:[%s7 + $0x6ac] sm:$0xff]
    %v1063 = vld [vmem:[%s7 + $0x6b4] sm:$0xff]
    %v1064 = vld [vmem:[%s7 + $0x6bc] sm:$0xff]
    %v1065 = vld [vmem:[%s7 + $0x6c4] sm:$0xf]
    %v1066 = vld [vmem:[%s7 + $0x6c8] sm:$0xff]
    %v1067 = vld [vmem:[%s7 + $0x6d0] sm:$0xff]
    %v1068 = vld [vmem:[%s7 + $0x6d8] sm:$0xff]
    %v1069 = vld [vmem:[%s7 + $0x6e0] sm:$0xf]
    %v1070 = vld [vmem:[%s7 + $0x6e4] sm:$0xff]
    %v1071 = vld [vmem:[%s7 + $0x6ec] sm:$0xff]
    %v1072 = vld [vmem:[%s7 + $0x6f4] sm:$0xff]
    %v1073 = vld [vmem:[%s7 + $0x6fc] sm:$0xf]
    %v1074 = vld [vmem:[%s8] sm:$0x7f]
    %v1076 = vlaneseq
    %v1077 = vshrl.u32 %v1076, 7
    %v1078 = vsub.s32 0, %v1077
    %v1079 = vrot.slane %v1074, %v1078
    %v1080 = vlaneseq
    %v1081 = vshrl.u32 %v1080, 7
    %v1082 = vsub.s32 1, %v1081
    %v1083 = vrot.slane %v1074, %v1082
    %v1084 = vlaneseq
    %v1085 = vshrl.u32 %v1084, 7
    %v1086 = vsub.s32 2, %v1085
    %v1087 = vrot.slane %v1074, %v1086
    %v1088 = vlaneseq
    %v1089 = vshrl.u32 %v1088, 7
    %v1090 = vsub.s32 3, %v1089
    %v1091 = vrot.slane %v1074, %v1090
    %v1092 = vlaneseq
    %v1093 = vshrl.u32 %v1092, 7
    %v1094 = vsub.s32 4, %v1093
    %v1095 = vrot.slane %v1074, %v1094
    %v1096 = vlaneseq
    %v1097 = vshrl.u32 %v1096, 7
    %v1098 = vsub.s32 5, %v1097
    %v1099 = vrot.slane %v1074, %v1098
    %v1100 = vlaneseq
    %v1101 = vshrl.u32 %v1100, 7
    %v1102 = vsub.s32 6, %v1101
    %v1103 = vrot.slane %v1074, %v1102
    %v1367 = vunpack.c.l.b16 %v818
    %v1368 = vunpack.c.h.b16 %v818
    %v1369 = vunpack.c.l.b16 %v819
    %v1370 = vunpack.c.h.b16 %v819
    %v1371 = vunpack.c.l.b16 %v820
    %v1372 = vunpack.c.h.b16 %v820
    %v1373 = vunpack.c.l.b16 %v821
    %v1374 = vunpack.c.l.b16 %v822
    %v1375 = vunpack.c.h.b16 %v822
    %v1376 = vunpack.c.l.b16 %v823
    %v1377 = vunpack.c.h.b16 %v823
    %v1378 = vunpack.c.l.b16 %v824
    %v1379 = vunpack.c.h.b16 %v824
    %v1380 = vunpack.c.l.b16 %v825
    %v1381 = vunpack.c.l.b16 %v826
    %v1382 = vunpack.c.h.b16 %v826
    %v1383 = vunpack.c.l.b16 %v827
    %v1384 = vunpack.c.h.b16 %v827
    %v1385 = vunpack.c.l.b16 %v828
    %v1386 = vunpack.c.h.b16 %v828
    %v1387 = vunpack.c.l.b16 %v829
    %v1388 = vunpack.c.l.b16 %v830
    %v1389 = vunpack.c.h.b16 %v830
    %v1390 = vunpack.c.l.b16 %v831
    %v1391 = vunpack.c.h.b16 %v831
    %v1392 = vunpack.c.l.b16 %v832
    %v1393 = vunpack.c.h.b16 %v832
    %v1394 = vunpack.c.l.b16 %v833
    %v1395 = vunpack.c.l.b16 %v834
    %v1396 = vunpack.c.h.b16 %v834
    %v1397 = vunpack.c.l.b16 %v835
    %v1398 = vunpack.c.h.b16 %v835
    %v1399 = vunpack.c.l.b16 %v836
    %v1400 = vunpack.c.h.b16 %v836
    %v1401 = vunpack.c.l.b16 %v837
    %v1402 = vunpack.c.l.b16 %v838
    %v1403 = vunpack.c.h.b16 %v838
    %v1404 = vunpack.c.l.b16 %v839
    %v1405 = vunpack.c.h.b16 %v839
    %v1406 = vunpack.c.l.b16 %v840
    %v1407 = vunpack.c.h.b16 %v840
    %v1408 = vunpack.c.l.b16 %v841
    %v1409 = vunpack.c.l.b16 %v842
    %v1410 = vunpack.c.h.b16 %v842
    %v1411 = vunpack.c.l.b16 %v843
    %v1412 = vunpack.c.h.b16 %v843
    %v1413 = vunpack.c.l.b16 %v844
    %v1414 = vunpack.c.h.b16 %v844
    %v1415 = vunpack.c.l.b16 %v845
    %v1416 = vunpack.c.l.b16 %v846
    %v1417 = vunpack.c.h.b16 %v846
    %v1418 = vunpack.c.l.b16 %v847
    %v1419 = vunpack.c.h.b16 %v847
    %v1420 = vunpack.c.l.b16 %v848
    %v1421 = vunpack.c.h.b16 %v848
    %v1422 = vunpack.c.l.b16 %v849
    %v1423 = vunpack.c.l.b16 %v850
    %v1424 = vunpack.c.h.b16 %v850
    %v1425 = vunpack.c.l.b16 %v851
    %v1426 = vunpack.c.h.b16 %v851
    %v1427 = vunpack.c.l.b16 %v852
    %v1428 = vunpack.c.h.b16 %v852
    %v1429 = vunpack.c.l.b16 %v853
    %v1430 = vunpack.c.l.b16 %v854
    %v1431 = vunpack.c.h.b16 %v854
    %v1432 = vunpack.c.l.b16 %v855
    %v1433 = vunpack.c.h.b16 %v855
    %v1434 = vunpack.c.l.b16 %v856
    %v1435 = vunpack.c.h.b16 %v856
    %v1436 = vunpack.c.l.b16 %v857
    %v1437 = vunpack.c.l.b16 %v858
    %v1438 = vunpack.c.h.b16 %v858
    %v1439 = vunpack.c.l.b16 %v859
    %v1440 = vunpack.c.h.b16 %v859
    %v1441 = vunpack.c.l.b16 %v860
    %v1442 = vunpack.c.h.b16 %v860
    %v1443 = vunpack.c.l.b16 %v861
    %v1444 = vunpack.c.l.b16 %v862
    %v1445 = vunpack.c.h.b16 %v862
    %v1446 = vunpack.c.l.b16 %v863
    %v1447 = vunpack.c.h.b16 %v863
    %v1448 = vunpack.c.l.b16 %v864
    %v1449 = vunpack.c.h.b16 %v864
    %v1450 = vunpack.c.l.b16 %v865
    %v1451 = vunpack.c.l.b16 %v866
    %v1452 = vunpack.c.h.b16 %v866
    %v1453 = vunpack.c.l.b16 %v867
    %v1454 = vunpack.c.h.b16 %v867
    %v1455 = vunpack.c.l.b16 %v868
    %v1456 = vunpack.c.h.b16 %v868
    %v1457 = vunpack.c.l.b16 %v869
    %v1458 = vunpack.c.l.b16 %v870
    %v1459 = vunpack.c.h.b16 %v870
    %v1460 = vunpack.c.l.b16 %v871
    %v1461 = vunpack.c.h.b16 %v871
    %v1462 = vunpack.c.l.b16 %v872
    %v1463 = vunpack.c.h.b16 %v872
    %v1464 = vunpack.c.l.b16 %v873
    %v1465 = vunpack.c.l.b16 %v874
    %v1466 = vunpack.c.h.b16 %v874
    %v1467 = vunpack.c.l.b16 %v875
    %v1468 = vunpack.c.h.b16 %v875
    %v1469 = vunpack.c.l.b16 %v876
    %v1470 = vunpack.c.h.b16 %v876
    %v1471 = vunpack.c.l.b16 %v877
    %v1472 = vunpack.c.l.b16 %v878
    %v1473 = vunpack.c.h.b16 %v878
    %v1474 = vunpack.c.l.b16 %v879
    %v1475 = vunpack.c.h.b16 %v879
    %v1476 = vunpack.c.l.b16 %v880
    %v1477 = vunpack.c.h.b16 %v880
    %v1478 = vunpack.c.l.b16 %v881
    %v1479 = vunpack.c.l.b16 %v882
    %v1480 = vunpack.c.h.b16 %v882
    %v1481 = vunpack.c.l.b16 %v883
    %v1482 = vunpack.c.h.b16 %v883
    %v1483 = vunpack.c.l.b16 %v884
    %v1484 = vunpack.c.h.b16 %v884
    %v1485 = vunpack.c.l.b16 %v885
    %v1486 = vunpack.c.l.b16 %v886
    %v1487 = vunpack.c.h.b16 %v886
    %v1488 = vunpack.c.l.b16 %v887
    %v1489 = vunpack.c.h.b16 %v887
    %v1490 = vunpack.c.l.b16 %v888
    %v1491 = vunpack.c.h.b16 %v888
    %v1492 = vunpack.c.l.b16 %v889
    %v1493 = vunpack.c.l.b16 %v890
    %v1494 = vunpack.c.h.b16 %v890
    %v1495 = vunpack.c.l.b16 %v891
    %v1496 = vunpack.c.h.b16 %v891
    %v1497 = vunpack.c.l.b16 %v892
    %v1498 = vunpack.c.h.b16 %v892
    %v1499 = vunpack.c.l.b16 %v893
    %v1500 = vunpack.c.l.b16 %v894
    %v1501 = vunpack.c.h.b16 %v894
    %v1502 = vunpack.c.l.b16 %v895
    %v1503 = vunpack.c.h.b16 %v895
    %v1504 = vunpack.c.l.b16 %v896
    %v1505 = vunpack.c.h.b16 %v896
    %v1506 = vunpack.c.l.b16 %v897
    %v1507 = vunpack.c.l.b16 %v898
    %v1508 = vunpack.c.h.b16 %v898
    %v1509 = vunpack.c.l.b16 %v899
    %v1510 = vunpack.c.h.b16 %v899
    %v1511 = vunpack.c.l.b16 %v900
    %v1512 = vunpack.c.h.b16 %v900
    %v1513 = vunpack.c.l.b16 %v901
    %v1514 = vunpack.c.l.b16 %v902
    %v1515 = vunpack.c.h.b16 %v902
    %v1516 = vunpack.c.l.b16 %v903
    %v1517 = vunpack.c.h.b16 %v903
    %v1518 = vunpack.c.l.b16 %v904
    %v1519 = vunpack.c.h.b16 %v904
    %v1520 = vunpack.c.l.b16 %v905
    %v1521 = vunpack.c.l.b16 %v906
    %v1522 = vunpack.c.h.b16 %v906
    %v1523 = vunpack.c.l.b16 %v907
    %v1524 = vunpack.c.h.b16 %v907
    %v1525 = vunpack.c.l.b16 %v908
    %v1526 = vunpack.c.h.b16 %v908
    %v1527 = vunpack.c.l.b16 %v909
    %v1528 = vunpack.c.l.b16 %v910
    %v1529 = vunpack.c.h.b16 %v910
    %v1530 = vunpack.c.l.b16 %v911
    %v1531 = vunpack.c.h.b16 %v911
    %v1532 = vunpack.c.l.b16 %v912
    %v1533 = vunpack.c.h.b16 %v912
    %v1534 = vunpack.c.l.b16 %v913
    %v1535 = vunpack.c.l.b16 %v914
    %v1536 = vunpack.c.h.b16 %v914
    %v1537 = vunpack.c.l.b16 %v915
    %v1538 = vunpack.c.h.b16 %v915
    %v1539 = vunpack.c.l.b16 %v916
    %v1540 = vunpack.c.h.b16 %v916
    %v1541 = vunpack.c.l.b16 %v917
    %v1542 = vunpack.c.l.b16 %v918
    %v1543 = vunpack.c.h.b16 %v918
    %v1544 = vunpack.c.l.b16 %v919
    %v1545 = vunpack.c.h.b16 %v919
    %v1546 = vunpack.c.l.b16 %v920
    %v1547 = vunpack.c.h.b16 %v920
    %v1548 = vunpack.c.l.b16 %v921
    %v1549 = vunpack.c.l.b16 %v922
    %v1550 = vunpack.c.h.b16 %v922
    %v1551 = vunpack.c.l.b16 %v923
    %v1552 = vunpack.c.h.b16 %v923
    %v1553 = vunpack.c.l.b16 %v924
    %v1554 = vunpack.c.h.b16 %v924
    %v1555 = vunpack.c.l.b16 %v925
    %v1556 = vunpack.c.l.b16 %v926
    %v1557 = vunpack.c.h.b16 %v926
    %v1558 = vunpack.c.l.b16 %v927
    %v1559 = vunpack.c.h.b16 %v927
    %v1560 = vunpack.c.l.b16 %v928
    %v1561 = vunpack.c.h.b16 %v928
    %v1562 = vunpack.c.l.b16 %v929
    %v1563 = vunpack.c.l.b16 %v930
    %v1564 = vunpack.c.h.b16 %v930
    %v1565 = vunpack.c.l.b16 %v931
    %v1566 = vunpack.c.h.b16 %v931
    %v1567 = vunpack.c.l.b16 %v932
    %v1568 = vunpack.c.h.b16 %v932
    %v1569 = vunpack.c.l.b16 %v933
    %v1570 = vunpack.c.l.b16 %v934
    %v1571 = vunpack.c.h.b16 %v934
    %v1572 = vunpack.c.l.b16 %v935
    %v1573 = vunpack.c.h.b16 %v935
    %v1574 = vunpack.c.l.b16 %v936
    %v1575 = vunpack.c.h.b16 %v936
    %v1576 = vunpack.c.l.b16 %v937
    %v1577 = vunpack.c.l.b16 %v938
    %v1578 = vunpack.c.h.b16 %v938
    %v1579 = vunpack.c.l.b16 %v939
    %v1580 = vunpack.c.h.b16 %v939
    %v1581 = vunpack.c.l.b16 %v940
    %v1582 = vunpack.c.h.b16 %v940
    %v1583 = vunpack.c.l.b16 %v941
    %v1584 = vunpack.c.l.b16 %v942
    %v1585 = vunpack.c.h.b16 %v942
    %v1586 = vunpack.c.l.b16 %v943
    %v1587 = vunpack.c.h.b16 %v943
    %v1588 = vunpack.c.l.b16 %v944
    %v1589 = vunpack.c.h.b16 %v944
    %v1590 = vunpack.c.l.b16 %v945
    %v1591 = vunpack.c.l.b16 %v946
    %v1592 = vunpack.c.h.b16 %v946
    %v1593 = vunpack.c.l.b16 %v947
    %v1594 = vunpack.c.h.b16 %v947
    %v1595 = vunpack.c.l.b16 %v948
    %v1596 = vunpack.c.h.b16 %v948
    %v1597 = vunpack.c.l.b16 %v949
    %v1598 = vunpack.c.l.b16 %v950
    %v1599 = vunpack.c.h.b16 %v950
    %v1600 = vunpack.c.l.b16 %v951
    %v1601 = vunpack.c.h.b16 %v951
    %v1602 = vunpack.c.l.b16 %v952
    %v1603 = vunpack.c.h.b16 %v952
    %v1604 = vunpack.c.l.b16 %v953
    %v1605 = vunpack.c.l.b16 %v954
    %v1606 = vunpack.c.h.b16 %v954
    %v1607 = vunpack.c.l.b16 %v955
    %v1608 = vunpack.c.h.b16 %v955
    %v1609 = vunpack.c.l.b16 %v956
    %v1610 = vunpack.c.h.b16 %v956
    %v1611 = vunpack.c.l.b16 %v957
    %v1612 = vunpack.c.l.b16 %v958
    %v1613 = vunpack.c.h.b16 %v958
    %v1614 = vunpack.c.l.b16 %v959
    %v1615 = vunpack.c.h.b16 %v959
    %v1616 = vunpack.c.l.b16 %v960
    %v1617 = vunpack.c.h.b16 %v960
    %v1618 = vunpack.c.l.b16 %v961
    %v1619 = vunpack.c.l.b16 %v962
    %v1620 = vunpack.c.h.b16 %v962
    %v1621 = vunpack.c.l.b16 %v963
    %v1622 = vunpack.c.h.b16 %v963
    %v1623 = vunpack.c.l.b16 %v964
    %v1624 = vunpack.c.h.b16 %v964
    %v1625 = vunpack.c.l.b16 %v965
    %v1626 = vunpack.c.l.b16 %v966
    %v1627 = vunpack.c.h.b16 %v966
    %v1628 = vunpack.c.l.b16 %v967
    %v1629 = vunpack.c.h.b16 %v967
    %v1630 = vunpack.c.l.b16 %v968
    %v1631 = vunpack.c.h.b16 %v968
    %v1632 = vunpack.c.l.b16 %v969
    %v1633 = vunpack.c.l.b16 %v970
    %v1634 = vunpack.c.h.b16 %v970
    %v1635 = vunpack.c.l.b16 %v971
    %v1636 = vunpack.c.h.b16 %v971
    %v1637 = vunpack.c.l.b16 %v972
    %v1638 = vunpack.c.h.b16 %v972
    %v1639 = vunpack.c.l.b16 %v973
    %v1640 = vunpack.c.l.b16 %v974
    %v1641 = vunpack.c.h.b16 %v974
    %v1642 = vunpack.c.l.b16 %v975
    %v1643 = vunpack.c.h.b16 %v975
    %v1644 = vunpack.c.l.b16 %v976
    %v1645 = vunpack.c.h.b16 %v976
    %v1646 = vunpack.c.l.b16 %v977
    %v1647 = vunpack.c.l.b16 %v978
    %v1648 = vunpack.c.h.b16 %v978
    %v1649 = vunpack.c.l.b16 %v979
    %v1650 = vunpack.c.h.b16 %v979
    %v1651 = vunpack.c.l.b16 %v980
    %v1652 = vunpack.c.h.b16 %v980
    %v1653 = vunpack.c.l.b16 %v981
    %v1654 = vunpack.c.l.b16 %v982
    %v1655 = vunpack.c.h.b16 %v982
    %v1656 = vunpack.c.l.b16 %v983
    %v1657 = vunpack.c.h.b16 %v983
    %v1658 = vunpack.c.l.b16 %v984
    %v1659 = vunpack.c.h.b16 %v984
    %v1660 = vunpack.c.l.b16 %v985
    %v1661 = vunpack.c.l.b16 %v986
    %v1662 = vunpack.c.h.b16 %v986
    %v1663 = vunpack.c.l.b16 %v987
    %v1664 = vunpack.c.h.b16 %v987
    %v1665 = vunpack.c.l.b16 %v988
    %v1666 = vunpack.c.h.b16 %v988
    %v1667 = vunpack.c.l.b16 %v989
    %v1668 = vunpack.c.l.b16 %v990
    %v1669 = vunpack.c.h.b16 %v990
    %v1670 = vunpack.c.l.b16 %v991
    %v1671 = vunpack.c.h.b16 %v991
    %v1672 = vunpack.c.l.b16 %v992
    %v1673 = vunpack.c.h.b16 %v992
    %v1674 = vunpack.c.l.b16 %v993
    %v1675 = vunpack.c.l.b16 %v994
    %v1676 = vunpack.c.h.b16 %v994
    %v1677 = vunpack.c.l.b16 %v995
    %v1678 = vunpack.c.h.b16 %v995
    %v1679 = vunpack.c.l.b16 %v996
    %v1680 = vunpack.c.h.b16 %v996
    %v1681 = vunpack.c.l.b16 %v997
    %v1682 = vunpack.c.l.b16 %v998
    %v1683 = vunpack.c.h.b16 %v998
    %v1684 = vunpack.c.l.b16 %v999
    %v1685 = vunpack.c.h.b16 %v999
    %v1686 = vunpack.c.l.b16 %v1000
    %v1687 = vunpack.c.h.b16 %v1000
    %v1688 = vunpack.c.l.b16 %v1001
    %v1689 = vunpack.c.l.b16 %v1002
    %v1690 = vunpack.c.h.b16 %v1002
    %v1691 = vunpack.c.l.b16 %v1003
    %v1692 = vunpack.c.h.b16 %v1003
    %v1693 = vunpack.c.l.b16 %v1004
    %v1694 = vunpack.c.h.b16 %v1004
    %v1695 = vunpack.c.l.b16 %v1005
    %v1696 = vunpack.c.l.b16 %v1006
    %v1697 = vunpack.c.h.b16 %v1006
    %v1698 = vunpack.c.l.b16 %v1007
    %v1699 = vunpack.c.h.b16 %v1007
    %v1700 = vunpack.c.l.b16 %v1008
    %v1701 = vunpack.c.h.b16 %v1008
    %v1702 = vunpack.c.l.b16 %v1009
    %v1703 = vunpack.c.l.b16 %v1010
    %v1704 = vunpack.c.h.b16 %v1010
    %v1705 = vunpack.c.l.b16 %v1011
    %v1706 = vunpack.c.h.b16 %v1011
    %v1707 = vunpack.c.l.b16 %v1012
    %v1708 = vunpack.c.h.b16 %v1012
    %v1709 = vunpack.c.l.b16 %v1013
    %v1710 = vunpack.c.l.b16 %v1014
    %v1711 = vunpack.c.h.b16 %v1014
    %v1712 = vunpack.c.l.b16 %v1015
    %v1713 = vunpack.c.h.b16 %v1015
    %v1714 = vunpack.c.l.b16 %v1016
    %v1715 = vunpack.c.h.b16 %v1016
    %v1716 = vunpack.c.l.b16 %v1017
    %v1717 = vunpack.c.l.b16 %v1018
    %v1718 = vunpack.c.h.b16 %v1018
    %v1719 = vunpack.c.l.b16 %v1019
    %v1720 = vunpack.c.h.b16 %v1019
    %v1721 = vunpack.c.l.b16 %v1020
    %v1722 = vunpack.c.h.b16 %v1020
    %v1723 = vunpack.c.l.b16 %v1021
    %v1724 = vunpack.c.l.b16 %v1022
    %v1725 = vunpack.c.h.b16 %v1022
    %v1726 = vunpack.c.l.b16 %v1023
    %v1727 = vunpack.c.h.b16 %v1023
    %v1728 = vunpack.c.l.b16 %v1024
    %v1729 = vunpack.c.h.b16 %v1024
    %v1730 = vunpack.c.l.b16 %v1025
    %v1731 = vunpack.c.l.b16 %v1026
    %v1732 = vunpack.c.h.b16 %v1026
    %v1733 = vunpack.c.l.b16 %v1027
    %v1734 = vunpack.c.h.b16 %v1027
    %v1735 = vunpack.c.l.b16 %v1028
    %v1736 = vunpack.c.h.b16 %v1028
    %v1737 = vunpack.c.l.b16 %v1029
    %v1738 = vunpack.c.l.b16 %v1030
    %v1739 = vunpack.c.h.b16 %v1030
    %v1740 = vunpack.c.l.b16 %v1031
    %v1741 = vunpack.c.h.b16 %v1031
    %v1742 = vunpack.c.l.b16 %v1032
    %v1743 = vunpack.c.h.b16 %v1032
    %v1744 = vunpack.c.l.b16 %v1033
    %v1745 = vunpack.c.l.b16 %v1034
    %v1746 = vunpack.c.h.b16 %v1034
    %v1747 = vunpack.c.l.b16 %v1035
    %v1748 = vunpack.c.h.b16 %v1035
    %v1749 = vunpack.c.l.b16 %v1036
    %v1750 = vunpack.c.h.b16 %v1036
    %v1751 = vunpack.c.l.b16 %v1037
    %v1752 = vunpack.c.l.b16 %v1038
    %v1753 = vunpack.c.h.b16 %v1038
    %v1754 = vunpack.c.l.b16 %v1039
    %v1755 = vunpack.c.h.b16 %v1039
    %v1756 = vunpack.c.l.b16 %v1040
    %v1757 = vunpack.c.h.b16 %v1040
    %v1758 = vunpack.c.l.b16 %v1041
    %v1759 = vunpack.c.l.b16 %v1042
    %v1760 = vunpack.c.h.b16 %v1042
    %v1761 = vunpack.c.l.b16 %v1043
    %v1762 = vunpack.c.h.b16 %v1043
    %v1763 = vunpack.c.l.b16 %v1044
    %v1764 = vunpack.c.h.b16 %v1044
    %v1765 = vunpack.c.l.b16 %v1045
    %v1766 = vunpack.c.l.b16 %v1046
    %v1767 = vunpack.c.h.b16 %v1046
    %v1768 = vunpack.c.l.b16 %v1047
    %v1769 = vunpack.c.h.b16 %v1047
    %v1770 = vunpack.c.l.b16 %v1048
    %v1771 = vunpack.c.h.b16 %v1048
    %v1772 = vunpack.c.l.b16 %v1049
    %v1773 = vunpack.c.l.b16 %v1050
    %v1774 = vunpack.c.h.b16 %v1050
    %v1775 = vunpack.c.l.b16 %v1051
    %v1776 = vunpack.c.h.b16 %v1051
    %v1777 = vunpack.c.l.b16 %v1052
    %v1778 = vunpack.c.h.b16 %v1052
    %v1779 = vunpack.c.l.b16 %v1053
    %v1780 = vunpack.c.l.b16 %v1054
    %v1781 = vunpack.c.h.b16 %v1054
    %v1782 = vunpack.c.l.b16 %v1055
    %v1783 = vunpack.c.h.b16 %v1055
    %v1784 = vunpack.c.l.b16 %v1056
    %v1785 = vunpack.c.h.b16 %v1056
    %v1786 = vunpack.c.l.b16 %v1057
    %v1787 = vunpack.c.l.b16 %v1058
    %v1788 = vunpack.c.h.b16 %v1058
    %v1789 = vunpack.c.l.b16 %v1059
    %v1790 = vunpack.c.h.b16 %v1059
    %v1791 = vunpack.c.l.b16 %v1060
    %v1792 = vunpack.c.h.b16 %v1060
    %v1793 = vunpack.c.l.b16 %v1061
    %v1794 = vunpack.c.l.b16 %v1062
    %v1795 = vunpack.c.h.b16 %v1062
    %v1796 = vunpack.c.l.b16 %v1063
    %v1797 = vunpack.c.h.b16 %v1063
    %v1798 = vunpack.c.l.b16 %v1064
    %v1799 = vunpack.c.h.b16 %v1064
    %v1800 = vunpack.c.l.b16 %v1065
    %v1801 = vunpack.c.l.b16 %v1066
    %v1802 = vunpack.c.h.b16 %v1066
    %v1803 = vunpack.c.l.b16 %v1067
    %v1804 = vunpack.c.h.b16 %v1067
    %v1805 = vunpack.c.l.b16 %v1068
    %v1806 = vunpack.c.h.b16 %v1068
    %v1807 = vunpack.c.l.b16 %v1069
    %v1808 = vunpack.c.l.b16 %v1070
    %v1809 = vunpack.c.h.b16 %v1070
    %v1810 = vunpack.c.l.b16 %v1071
    %v1811 = vunpack.c.h.b16 %v1071
    %v1812 = vunpack.c.l.b16 %v1072
    %v1813 = vunpack.c.h.b16 %v1072
    %v1814 = vunpack.c.l.b16 %v1073
    %v1815 = vpack.c.b16 %v1374, %v1367
    %v1816 = vpack.c.b16 %v1375, %v1368
    %v1817 = vpack.c.b16 %v1376, %v1369
    %v1818 = vpack.c.b16 %v1377, %v1370
    %v1819 = vpack.c.b16 %v1378, %v1371
    %v1820 = vpack.c.b16 %v1379, %v1372
    %v1821 = vpack.c.b16 %v1380, %v1373
    %v1822 = vpack.c.b16 %v1388, %v1381
    %v1823 = vpack.c.b16 %v1389, %v1382
    %v1824 = vpack.c.b16 %v1390, %v1383
    %v1825 = vpack.c.b16 %v1391, %v1384
    %v1826 = vpack.c.b16 %v1392, %v1385
    %v1827 = vpack.c.b16 %v1393, %v1386
    %v1828 = vpack.c.b16 %v1394, %v1387
    %v1829 = vpack.c.b16 %v1402, %v1395
    %v1830 = vpack.c.b16 %v1403, %v1396
    %v1831 = vpack.c.b16 %v1404, %v1397
    %v1832 = vpack.c.b16 %v1405, %v1398
    %v1833 = vpack.c.b16 %v1406, %v1399
    %v1834 = vpack.c.b16 %v1407, %v1400
    %v1835 = vpack.c.b16 %v1408, %v1401
    %v1836 = vpack.c.b16 %v1416, %v1409
    %v1837 = vpack.c.b16 %v1417, %v1410
    %v1838 = vpack.c.b16 %v1418, %v1411
    %v1839 = vpack.c.b16 %v1419, %v1412
    %v1840 = vpack.c.b16 %v1420, %v1413
    %v1841 = vpack.c.b16 %v1421, %v1414
    %v1842 = vpack.c.b16 %v1422, %v1415
    %v1843 = vpack.c.b16 %v1430, %v1423
    %v1844 = vpack.c.b16 %v1431, %v1424
    %v1845 = vpack.c.b16 %v1432, %v1425
    %v1846 = vpack.c.b16 %v1433, %v1426
    %v1847 = vpack.c.b16 %v1434, %v1427
    %v1848 = vpack.c.b16 %v1435, %v1428
    %v1849 = vpack.c.b16 %v1436, %v1429
    %v1850 = vpack.c.b16 %v1444, %v1437
    %v1851 = vpack.c.b16 %v1445, %v1438
    %v1852 = vpack.c.b16 %v1446, %v1439
    %v1853 = vpack.c.b16 %v1447, %v1440
    %v1854 = vpack.c.b16 %v1448, %v1441
    %v1855 = vpack.c.b16 %v1449, %v1442
    %v1856 = vpack.c.b16 %v1450, %v1443
    %v1857 = vpack.c.b16 %v1458, %v1451
    %v1858 = vpack.c.b16 %v1459, %v1452
    %v1859 = vpack.c.b16 %v1460, %v1453
    %v1860 = vpack.c.b16 %v1461, %v1454
    %v1861 = vpack.c.b16 %v1462, %v1455
    %v1862 = vpack.c.b16 %v1463, %v1456
    %v1863 = vpack.c.b16 %v1464, %v1457
    %v1864 = vpack.c.b16 %v1472, %v1465
    %v1865 = vpack.c.b16 %v1473, %v1466
    %v1866 = vpack.c.b16 %v1474, %v1467
    %v1867 = vpack.c.b16 %v1475, %v1468
    %v1868 = vpack.c.b16 %v1476, %v1469
    %v1869 = vpack.c.b16 %v1477, %v1470
    %v1870 = vpack.c.b16 %v1478, %v1471
    %v1871 = vpack.c.b16 %v1486, %v1479
    %v1872 = vpack.c.b16 %v1487, %v1480
    %v1873 = vpack.c.b16 %v1488, %v1481
    %v1874 = vpack.c.b16 %v1489, %v1482
    %v1875 = vpack.c.b16 %v1490, %v1483
    %v1876 = vpack.c.b16 %v1491, %v1484
    %v1877 = vpack.c.b16 %v1492, %v1485
    %v1878 = vpack.c.b16 %v1500, %v1493
    %v1879 = vpack.c.b16 %v1501, %v1494
    %v1880 = vpack.c.b16 %v1502, %v1495
    %v1881 = vpack.c.b16 %v1503, %v1496
    %v1882 = vpack.c.b16 %v1504, %v1497
    %v1883 = vpack.c.b16 %v1505, %v1498
    %v1884 = vpack.c.b16 %v1506, %v1499
    %v1885 = vpack.c.b16 %v1514, %v1507
    %v1886 = vpack.c.b16 %v1515, %v1508
    %v1887 = vpack.c.b16 %v1516, %v1509
    %v1888 = vpack.c.b16 %v1517, %v1510
    %v1889 = vpack.c.b16 %v1518, %v1511
    %v1890 = vpack.c.b16 %v1519, %v1512
    %v1891 = vpack.c.b16 %v1520, %v1513
    %v1892 = vpack.c.b16 %v1528, %v1521
    %v1893 = vpack.c.b16 %v1529, %v1522
    %v1894 = vpack.c.b16 %v1530, %v1523
    %v1895 = vpack.c.b16 %v1531, %v1524
    %v1896 = vpack.c.b16 %v1532, %v1525
    %v1897 = vpack.c.b16 %v1533, %v1526
    %v1898 = vpack.c.b16 %v1534, %v1527
    %v1899 = vpack.c.b16 %v1542, %v1535
    %v1900 = vpack.c.b16 %v1543, %v1536
    %v1901 = vpack.c.b16 %v1544, %v1537
    %v1902 = vpack.c.b16 %v1545, %v1538
    %v1903 = vpack.c.b16 %v1546, %v1539
    %v1904 = vpack.c.b16 %v1547, %v1540
    %v1905 = vpack.c.b16 %v1548, %v1541
    %v1906 = vpack.c.b16 %v1556, %v1549
    %v1907 = vpack.c.b16 %v1557, %v1550
    %v1908 = vpack.c.b16 %v1558, %v1551
    %v1909 = vpack.c.b16 %v1559, %v1552
    %v1910 = vpack.c.b16 %v1560, %v1553
    %v1911 = vpack.c.b16 %v1561, %v1554
    %v1912 = vpack.c.b16 %v1562, %v1555
    %v1913 = vpack.c.b16 %v1570, %v1563
    %v1914 = vpack.c.b16 %v1571, %v1564
    %v1915 = vpack.c.b16 %v1572, %v1565
    %v1916 = vpack.c.b16 %v1573, %v1566
    %v1917 = vpack.c.b16 %v1574, %v1567
    %v1918 = vpack.c.b16 %v1575, %v1568
    %v1919 = vpack.c.b16 %v1576, %v1569
    %v1920 = vpack.c.b16 %v1584, %v1577
    %v1921 = vpack.c.b16 %v1585, %v1578
    %v1922 = vpack.c.b16 %v1586, %v1579
    %v1923 = vpack.c.b16 %v1587, %v1580
    %v1924 = vpack.c.b16 %v1588, %v1581
    %v1925 = vpack.c.b16 %v1589, %v1582
    %v1926 = vpack.c.b16 %v1590, %v1583
    %v1927 = vpack.c.b16 %v1598, %v1591
    %v1928 = vpack.c.b16 %v1599, %v1592
    %v1929 = vpack.c.b16 %v1600, %v1593
    %v1930 = vpack.c.b16 %v1601, %v1594
    %v1931 = vpack.c.b16 %v1602, %v1595
    %v1932 = vpack.c.b16 %v1603, %v1596
    %v1933 = vpack.c.b16 %v1604, %v1597
    %v1934 = vpack.c.b16 %v1612, %v1605
    %v1935 = vpack.c.b16 %v1613, %v1606
    %v1936 = vpack.c.b16 %v1614, %v1607
    %v1937 = vpack.c.b16 %v1615, %v1608
    %v1938 = vpack.c.b16 %v1616, %v1609
    %v1939 = vpack.c.b16 %v1617, %v1610
    %v1940 = vpack.c.b16 %v1618, %v1611
    %v1941 = vpack.c.b16 %v1626, %v1619
    %v1942 = vpack.c.b16 %v1627, %v1620
    %v1943 = vpack.c.b16 %v1628, %v1621
    %v1944 = vpack.c.b16 %v1629, %v1622
    %v1945 = vpack.c.b16 %v1630, %v1623
    %v1946 = vpack.c.b16 %v1631, %v1624
    %v1947 = vpack.c.b16 %v1632, %v1625
    %v1948 = vpack.c.b16 %v1640, %v1633
    %v1949 = vpack.c.b16 %v1641, %v1634
    %v1950 = vpack.c.b16 %v1642, %v1635
    %v1951 = vpack.c.b16 %v1643, %v1636
    %v1952 = vpack.c.b16 %v1644, %v1637
    %v1953 = vpack.c.b16 %v1645, %v1638
    %v1954 = vpack.c.b16 %v1646, %v1639
    %v1955 = vpack.c.b16 %v1654, %v1647
    %v1956 = vpack.c.b16 %v1655, %v1648
    %v1957 = vpack.c.b16 %v1656, %v1649
    %v1958 = vpack.c.b16 %v1657, %v1650
    %v1959 = vpack.c.b16 %v1658, %v1651
    %v1960 = vpack.c.b16 %v1659, %v1652
    %v1961 = vpack.c.b16 %v1660, %v1653
    %v1962 = vpack.c.b16 %v1668, %v1661
    %v1963 = vpack.c.b16 %v1669, %v1662
    %v1964 = vpack.c.b16 %v1670, %v1663
    %v1965 = vpack.c.b16 %v1671, %v1664
    %v1966 = vpack.c.b16 %v1672, %v1665
    %v1967 = vpack.c.b16 %v1673, %v1666
    %v1968 = vpack.c.b16 %v1674, %v1667
    %v1969 = vpack.c.b16 %v1682, %v1675
    %v1970 = vpack.c.b16 %v1683, %v1676
    %v1971 = vpack.c.b16 %v1684, %v1677
    %v1972 = vpack.c.b16 %v1685, %v1678
    %v1973 = vpack.c.b16 %v1686, %v1679
    %v1974 = vpack.c.b16 %v1687, %v1680
    %v1975 = vpack.c.b16 %v1688, %v1681
    %v1976 = vpack.c.b16 %v1696, %v1689
    %v1977 = vpack.c.b16 %v1697, %v1690
    %v1978 = vpack.c.b16 %v1698, %v1691
    %v1979 = vpack.c.b16 %v1699, %v1692
    %v1980 = vpack.c.b16 %v1700, %v1693
    %v1981 = vpack.c.b16 %v1701, %v1694
    %v1982 = vpack.c.b16 %v1702, %v1695
    %v1983 = vpack.c.b16 %v1710, %v1703
    %v1984 = vpack.c.b16 %v1711, %v1704
    %v1985 = vpack.c.b16 %v1712, %v1705
    %v1986 = vpack.c.b16 %v1713, %v1706
    %v1987 = vpack.c.b16 %v1714, %v1707
    %v1988 = vpack.c.b16 %v1715, %v1708
    %v1989 = vpack.c.b16 %v1716, %v1709
    %v1990 = vpack.c.b16 %v1724, %v1717
    %v1991 = vpack.c.b16 %v1725, %v1718
    %v1992 = vpack.c.b16 %v1726, %v1719
    %v1993 = vpack.c.b16 %v1727, %v1720
    %v1994 = vpack.c.b16 %v1728, %v1721
    %v1995 = vpack.c.b16 %v1729, %v1722
    %v1996 = vpack.c.b16 %v1730, %v1723
    %v1997 = vpack.c.b16 %v1738, %v1731
    %v1998 = vpack.c.b16 %v1739, %v1732
    %v1999 = vpack.c.b16 %v1740, %v1733
    %v2000 = vpack.c.b16 %v1741, %v1734
    %v2001 = vpack.c.b16 %v1742, %v1735
    %v2002 = vpack.c.b16 %v1743, %v1736
    %v2003 = vpack.c.b16 %v1744, %v1737
    %v2004 = vpack.c.b16 %v1752, %v1745
    %v2005 = vpack.c.b16 %v1753, %v1746
    %v2006 = vpack.c.b16 %v1754, %v1747
    %v2007 = vpack.c.b16 %v1755, %v1748
    %v2008 = vpack.c.b16 %v1756, %v1749
    %v2009 = vpack.c.b16 %v1757, %v1750
    %v2010 = vpack.c.b16 %v1758, %v1751
    %v2011 = vpack.c.b16 %v1766, %v1759
    %v2012 = vpack.c.b16 %v1767, %v1760
    %v2013 = vpack.c.b16 %v1768, %v1761
    %v2014 = vpack.c.b16 %v1769, %v1762
    %v2015 = vpack.c.b16 %v1770, %v1763
    %v2016 = vpack.c.b16 %v1771, %v1764
    %v2017 = vpack.c.b16 %v1772, %v1765
    %v2018 = vpack.c.b16 %v1780, %v1773
    %v2019 = vpack.c.b16 %v1781, %v1774
    %v2020 = vpack.c.b16 %v1782, %v1775
    %v2021 = vpack.c.b16 %v1783, %v1776
    %v2022 = vpack.c.b16 %v1784, %v1777
    %v2023 = vpack.c.b16 %v1785, %v1778
    %v2024 = vpack.c.b16 %v1786, %v1779
    %v2025 = vpack.c.b16 %v1794, %v1787
    %v2026 = vpack.c.b16 %v1795, %v1788
    %v2027 = vpack.c.b16 %v1796, %v1789
    %v2028 = vpack.c.b16 %v1797, %v1790
    %v2029 = vpack.c.b16 %v1798, %v1791
    %v2030 = vpack.c.b16 %v1799, %v1792
    %v2031 = vpack.c.b16 %v1800, %v1793
    %v2032 = vpack.c.b16 %v1808, %v1801
    %v2033 = vpack.c.b16 %v1809, %v1802
    %v2034 = vpack.c.b16 %v1810, %v1803
    %v2035 = vpack.c.b16 %v1811, %v1804
    %v2036 = vpack.c.b16 %v1812, %v1805
    %v2037 = vpack.c.b16 %v1813, %v1806
    %v2038 = vpack.c.b16 %v1814, %v1807
    %2263 = vmatprep.subr.bf16.mxu0 %v1816
    %2264 = vmatpush1.bf16.msra.mxu0 %v1815
    %2265 = vmatprep.subr.bf16.mxu0 %v1823
    %2266 = vmatpush1.bf16.msra.mxu0 %v1822
    %2267 = vmatprep.subr.bf16.mxu0 %v1830
    %2268 = vmatpush1.bf16.msra.mxu0 %v1829
    %2269 = vmatprep.subr.bf16.mxu0 %v1837
    %2270 = vmatpush1.bf16.msra.mxu0 %v1836
    %2271 = vmatprep.subr.bf16.mxu0 %v1844
    %2272 = vmatpush1.bf16.msra.mxu0 %v1843
    %2273 = vmatprep.subr.bf16.mxu0 %v1851
    %2274 = vmatpush1.bf16.msra.mxu0 %v1850
    %2275 = vmatprep.subr.bf16.mxu0 %v1858
    %2276 = vmatpush1.bf16.msra.mxu0 %v1857
    %2277 = vmatprep.subr.bf16.mxu0 %v1865
    %2278 = vmatpush1.bf16.msra.mxu0 %v1864
    %2279 = vmatprep.subr.bf16.mxu0 %v1872
    %2280 = vmatpush1.bf16.msra.mxu0 %v1871
    %2281 = vmatprep.subr.bf16.mxu0 %v1879
    %2282 = vmatpush1.bf16.msra.mxu0 %v1878
    %2283 = vmatprep.subr.bf16.mxu0 %v1886
    %2284 = vmatpush1.bf16.msra.mxu0 %v1885
    %2285 = vmatprep.subr.bf16.mxu0 %v1893
    %2286 = vmatpush1.bf16.msra.mxu0 %v1892
    %2287 = vmatprep.subr.bf16.mxu0 %v1900
    %2288 = vmatpush1.bf16.msra.mxu0 %v1899
    %2289 = vmatprep.subr.bf16.mxu0 %v1907
    %2290 = vmatpush1.bf16.msra.mxu0 %v1906
    %2291 = vmatprep.subr.bf16.mxu0 %v1914
    %2292 = vmatpush1.bf16.msra.mxu0 %v1913
    %2293 = vmatprep.subr.bf16.mxu0 %v1921
    %2294 = vmatpush1.bf16.msra.mxu0 %v1920
    %2295 = vmatprep.mubr.bf16.mxu0 %v815
    %2296 = vmatmul.mubr.bf16.gmra.mrb[0].mxu0 %v814
    %v2297 = vpop.f32.mrb[0].mxu0
    %v2298 = vadd.f32 %v1079, %v2297
    %v2299 = vpop.f32.mrb[0].mxu0
    %v2300 = vadd.f32 %v1083, %v2299
    %v2301 = vpop.f32.mrb[0].mxu0
    %v2302 = vadd.f32 %v1079, %v2301
    %v2303 = vpop.f32.mrb[0].mxu0
    %v2304 = vadd.f32 %v1083, %v2303
    %2305 = vdwg.mxu0
    %2306 = vmatprep.subr.bf16.mxu0 %v1928
    %2307 = vmatpush1.bf16.msra.mxu0 %v1927
    %2308 = vmatprep.subr.bf16.mxu0 %v1935
    %2309 = vmatpush1.bf16.msra.mxu0 %v1934
    %2310 = vmatprep.subr.bf16.mxu0 %v1942
    %2311 = vmatpush1.bf16.msra.mxu0 %v1941
    %2312 = vmatprep.subr.bf16.mxu0 %v1949
    %2313 = vmatpush1.bf16.msra.mxu0 %v1948
    %2314 = vmatprep.subr.bf16.mxu0 %v1956
    %2315 = vmatpush1.bf16.msra.mxu0 %v1955
    %2316 = vmatprep.subr.bf16.mxu0 %v1963
    %2317 = vmatpush1.bf16.msra.mxu0 %v1962
    %2318 = vmatprep.subr.bf16.mxu0 %v1970
    %2319 = vmatpush1.bf16.msra.mxu0 %v1969
    %2320 = vmatprep.subr.bf16.mxu0 %v1977
    %2321 = vmatpush1.bf16.msra.mxu0 %v1976
    %2322 = vmatprep.subr.bf16.mxu0 %v1984
    %2323 = vmatpush1.bf16.msra.mxu0 %v1983
    %2324 = vmatprep.subr.bf16.mxu0 %v1991
    %2325 = vmatpush1.bf16.msra.mxu0 %v1990
    %2326 = vmatprep.subr.bf16.mxu0 %v1998
    %2327 = vmatpush1.bf16.msra.mxu0 %v1997
    %2328 = vmatprep.subr.bf16.mxu0 %v2005
    %2329 = vmatpush1.bf16.msra.mxu0 %v2004
    %2330 = vmatprep.subr.bf16.mxu0 %v2012
    %2331 = vmatpush1.bf16.msra.mxu0 %v2011
    %2332 = vmatprep.subr.bf16.mxu0 %v2019
    %2333 = vmatpush1.bf16.msra.mxu0 %v2018
    %2334 = vmatprep.subr.bf16.mxu0 %v2026
    %2335 = vmatpush1.bf16.msra.mxu0 %v2025
    %2336 = vmatprep.subr.bf16.mxu0 %v2033
    %2337 = vmatpush1.bf16.msra.mxu0 %v2032
    %2338 = vmatprep.mubr.bf16.mxu0 %v817
    %2339 = vmatmul.mubr.bf16.gmra.mrb[0].mxu0 %v816
    %v2340 = vpop.f32.mrb[0].mxu0
    %v2341 = vadd.f32 %v2298, %v2340
    %v2342 = vpop.f32.mrb[0].mxu0
    %v2343 = vadd.f32 %v2300, %v2342
    %v2344 = vpop.f32.mrb[0].mxu0
    %v2345 = vadd.f32 %v2302, %v2344
    %v2346 = vpop.f32.mrb[0].mxu0
    %v2347 = vadd.f32 %v2304, %v2346
    %2348 = vdwg.mxu0
    %2349 = vmatprep.subr.bf16.mxu0 %v1818
    %2350 = vmatpush1.bf16.msra.mxu0 %v1817
    %2351 = vmatprep.subr.bf16.mxu0 %v1825
    %2352 = vmatpush1.bf16.msra.mxu0 %v1824
    %2353 = vmatprep.subr.bf16.mxu0 %v1832
    %2354 = vmatpush1.bf16.msra.mxu0 %v1831
    %2355 = vmatprep.subr.bf16.mxu0 %v1839
    %2356 = vmatpush1.bf16.msra.mxu0 %v1838
    %2357 = vmatprep.subr.bf16.mxu0 %v1846
    %2358 = vmatpush1.bf16.msra.mxu0 %v1845
    %2359 = vmatprep.subr.bf16.mxu0 %v1853
    %2360 = vmatpush1.bf16.msra.mxu0 %v1852
    %2361 = vmatprep.subr.bf16.mxu0 %v1860
    %2362 = vmatpush1.bf16.msra.mxu0 %v1859
    %2363 = vmatprep.subr.bf16.mxu0 %v1867
    %2364 = vmatpush1.bf16.msra.mxu0 %v1866
    %2365 = vmatprep.subr.bf16.mxu0 %v1874
    %2366 = vmatpush1.bf16.msra.mxu0 %v1873
    %2367 = vmatprep.subr.bf16.mxu0 %v1881
    %2368 = vmatpush1.bf16.msra.mxu0 %v1880
    %2369 = vmatprep.subr.bf16.mxu0 %v1888
    %2370 = vmatpush1.bf16.msra.mxu0 %v1887
    %2371 = vmatprep.subr.bf16.mxu0 %v1895
    %2372 = vmatpush1.bf16.msra.mxu0 %v1894
    %2373 = vmatprep.subr.bf16.mxu0 %v1902
    %2374 = vmatpush1.bf16.msra.mxu0 %v1901
    %2375 = vmatprep.subr.bf16.mxu0 %v1909
    %2376 = vmatpush1.bf16.msra.mxu0 %v1908
    %2377 = vmatprep.subr.bf16.mxu0 %v1916
    %2378 = vmatpush1.bf16.msra.mxu0 %v1915
    %2379 = vmatprep.subr.bf16.mxu0 %v1923
    %2380 = vmatpush1.bf16.msra.mxu0 %v1922
    %2381 = vmatprep.mubr.bf16.mxu0 %v815
    %2382 = vmatmul.mubr.bf16.gmra.mrb[0].mxu0 %v814
    %v2383 = vpop.f32.mrb[0].mxu0
    %v2384 = vadd.f32 %v1087, %v2383
    %v2385 = vpop.f32.mrb[0].mxu0
    %v2386 = vadd.f32 %v1091, %v2385
    %v2387 = vpop.f32.mrb[0].mxu0
    %v2388 = vadd.f32 %v1087, %v2387
    %v2389 = vpop.f32.mrb[0].mxu0
    %v2390 = vadd.f32 %v1091, %v2389
    %2391 = vdwg.mxu0
    %2392 = vmatprep.subr.bf16.mxu0 %v1930
    %2393 = vmatpush1.bf16.msra.mxu0 %v1929
    %2394 = vmatprep.subr.bf16.mxu0 %v1937
    %2395 = vmatpush1.bf16.msra.mxu0 %v1936
    %2396 = vmatprep.subr.bf16.mxu0 %v1944
    %2397 = vmatpush1.bf16.msra.mxu0 %v1943
    %2398 = vmatprep.subr.bf16.mxu0 %v1951
    %2399 = vmatpush1.bf16.msra.mxu0 %v1950
    %2400 = vmatprep.subr.bf16.mxu0 %v1958
    %2401 = vmatpush1.bf16.msra.mxu0 %v1957
    %2402 = vmatprep.subr.bf16.mxu0 %v1965
    %2403 = vmatpush1.bf16.msra.mxu0 %v1964
    %2404 = vmatprep.subr.bf16.mxu0 %v1972
    %2405 = vmatpush1.bf16.msra.mxu0 %v1971
    %2406 = vmatprep.subr.bf16.mxu0 %v1979
    %2407 = vmatpush1.bf16.msra.mxu0 %v1978
    %2408 = vmatprep.subr.bf16.mxu0 %v1986
    %2409 = vmatpush1.bf16.msra.mxu0 %v1985
    %2410 = vmatprep.subr.bf16.mxu0 %v1993
    %2411 = vmatpush1.bf16.msra.mxu0 %v1992
    %2412 = vmatprep.subr.bf16.mxu0 %v2000
    %2413 = vmatpush1.bf16.msra.mxu0 %v1999
    %2414 = vmatprep.subr.bf16.mxu0 %v2007
    %2415 = vmatpush1.bf16.msra.mxu0 %v2006
    %2416 = vmatprep.subr.bf16.mxu0 %v2014
    %2417 = vmatpush1.bf16.msra.mxu0 %v2013
    %2418 = vmatprep.subr.bf16.mxu0 %v2021
    %2419 = vmatpush1.bf16.msra.mxu0 %v2020
    %2420 = vmatprep.subr.bf16.mxu0 %v2028
    %2421 = vmatpush1.bf16.msra.mxu0 %v2027
    %2422 = vmatprep.subr.bf16.mxu0 %v2035
    %2423 = vmatpush1.bf16.msra.mxu0 %v2034
    %2424 = vmatprep.mubr.bf16.mxu0 %v817
    %2425 = vmatmul.mubr.bf16.gmra.mrb[0].mxu0 %v816
    %v2426 = vpop.f32.mrb[0].mxu0
    %v2427 = vadd.f32 %v2384, %v2426
    %v2428 = vpop.f32.mrb[0].mxu0
    %v2429 = vadd.f32 %v2386, %v2428
    %v2430 = vpop.f32.mrb[0].mxu0
    %v2431 = vadd.f32 %v2388, %v2430
    %v2432 = vpop.f32.mrb[0].mxu0
    %v2433 = vadd.f32 %v2390, %v2432
    %2434 = vdwg.mxu0
    %2435 = vmatprep.subr.bf16.mxu0 %v1820
    %2436 = vmatpush1.bf16.msra.mxu0 %v1819
    %2437 = vmatprep.subr.bf16.mxu0 %v1827
    %2438 = vmatpush1.bf16.msra.mxu0 %v1826
    %2439 = vmatprep.subr.bf16.mxu0 %v1834
    %2440 = vmatpush1.bf16.msra.mxu0 %v1833
    %2441 = vmatprep.subr.bf16.mxu0 %v1841
    %2442 = vmatpush1.bf16.msra.mxu0 %v1840
    %2443 = vmatprep.subr.bf16.mxu0 %v1848
    %2444 = vmatpush1.bf16.msra.mxu0 %v1847
    %2445 = vmatprep.subr.bf16.mxu0 %v1855
    %2446 = vmatpush1.bf16.msra.mxu0 %v1854
    %2447 = vmatprep.subr.bf16.mxu0 %v1862
    %2448 = vmatpush1.bf16.msra.mxu0 %v1861
    %2449 = vmatprep.subr.bf16.mxu0 %v1869
    %2450 = vmatpush1.bf16.msra.mxu0 %v1868
    %2451 = vmatprep.subr.bf16.mxu0 %v1876
    %2452 = vmatpush1.bf16.msra.mxu0 %v1875
    %2453 = vmatprep.subr.bf16.mxu0 %v1883
    %2454 = vmatpush1.bf16.msra.mxu0 %v1882
    %2455 = vmatprep.subr.bf16.mxu0 %v1890
    %2456 = vmatpush1.bf16.msra.mxu0 %v1889
    %2457 = vmatprep.subr.bf16.mxu0 %v1897
    %2458 = vmatpush1.bf16.msra.mxu0 %v1896
    %2459 = vmatprep.subr.bf16.mxu0 %v1904
    %2460 = vmatpush1.bf16.msra.mxu0 %v1903
    %2461 = vmatprep.subr.bf16.mxu0 %v1911
    %2462 = vmatpush1.bf16.msra.mxu0 %v1910
    %2463 = vmatprep.subr.bf16.mxu0 %v1918
    %2464 = vmatpush1.bf16.msra.mxu0 %v1917
    %2465 = vmatprep.subr.bf16.mxu0 %v1925
    %2466 = vmatpush1.bf16.msra.mxu0 %v1924
    %2467 = vmatprep.mubr.bf16.mxu0 %v815
    %2468 = vmatmul.mubr.bf16.gmra.mrb[0].mxu0 %v814
    %v2469 = vpop.f32.mrb[0].mxu0
    %v2470 = vadd.f32 %v1095, %v2469
    %v2471 = vpop.f32.mrb[0].mxu0
    %v2472 = vadd.f32 %v1099, %v2471
    %v2473 = vpop.f32.mrb[0].mxu0
    %v2474 = vadd.f32 %v1095, %v2473
    %v2475 = vpop.f32.mrb[0].mxu0
    %v2476 = vadd.f32 %v1099, %v2475
    %2477 = vdwg.mxu0
    %2478 = vmatprep.subr.bf16.mxu0 %v1932
    %2479 = vmatpush1.bf16.msra.mxu0 %v1931
    %2480 = vmatprep.subr.bf16.mxu0 %v1939
    %2481 = vmatpush1.bf16.msra.mxu0 %v1938
    %2482 = vmatprep.subr.bf16.mxu0 %v1946
    %2483 = vmatpush1.bf16.msra.mxu0 %v1945
    %2484 = vmatprep.subr.bf16.mxu0 %v1953
    %2485 = vmatpush1.bf16.msra.mxu0 %v1952
    %2486 = vmatprep.subr.bf16.mxu0 %v1960
    %2487 = vmatpush1.bf16.msra.mxu0 %v1959
    %2488 = vmatprep.subr.bf16.mxu0 %v1967
    %2489 = vmatpush1.bf16.msra.mxu0 %v1966
    %2490 = vmatprep.subr.bf16.mxu0 %v1974
    %2491 = vmatpush1.bf16.msra.mxu0 %v1973
    %2492 = vmatprep.subr.bf16.mxu0 %v1981
    %2493 = vmatpush1.bf16.msra.mxu0 %v1980
    %2494 = vmatprep.subr.bf16.mxu0 %v1988
    %2495 = vmatpush1.bf16.msra.mxu0 %v1987
    %2496 = vmatprep.subr.bf16.mxu0 %v1995
    %2497 = vmatpush1.bf16.msra.mxu0 %v1994
    %2498 = vmatprep.subr.bf16.mxu0 %v2002
    %2499 = vmatpush1.bf16.msra.mxu0 %v2001
    %2500 = vmatprep.subr.bf16.mxu0 %v2009
    %2501 = vmatpush1.bf16.msra.mxu0 %v2008
    %2502 = vmatprep.subr.bf16.mxu0 %v2016
    %2503 = vmatpush1.bf16.msra.mxu0 %v2015
    %2504 = vmatprep.subr.bf16.mxu0 %v2023
    %2505 = vmatpush1.bf16.msra.mxu0 %v2022
    %2506 = vmatprep.subr.bf16.mxu0 %v2030
    %2507 = vmatpush1.bf16.msra.mxu0 %v2029
    %2508 = vmatprep.subr.bf16.mxu0 %v2037
    %2509 = vmatpush1.bf16.msra.mxu0 %v2036
    %2510 = vmatprep.mubr.bf16.mxu0 %v817
    %2511 = vmatmul.mubr.bf16.gmra.mrb[0].mxu0 %v816
    %v2512 = vpop.f32.mrb[0].mxu0
    %v2513 = vadd.f32 %v2470, %v2512
    %v2514 = vpop.f32.mrb[0].mxu0
    %v2515 = vadd.f32 %v2472, %v2514
    %v2516 = vpop.f32.mrb[0].mxu0
    %v2517 = vadd.f32 %v2474, %v2516
    %v2518 = vpop.f32.mrb[0].mxu0
    %v2519 = vadd.f32 %v2476, %v2518
    %2520 = vdwg.mxu0
    %2521 = vmatprep.subr.bf16.mxu0 0
    %2522 = vmatpush1.bf16.msra.mxu0 %v1821
    %2523 = vmatprep.subr.bf16.mxu0 0
    %2524 = vmatpush1.bf16.msra.mxu0 %v1828
    %2525 = vmatprep.subr.bf16.mxu0 0
    %2526 = vmatpush1.bf16.msra.mxu0 %v1835
    %2527 = vmatprep.subr.bf16.mxu0 0
    %2528 = vmatpush1.bf16.msra.mxu0 %v1842
    %2529 = vmatprep.subr.bf16.mxu0 0
    %2530 = vmatpush1.bf16.msra.mxu0 %v1849
    %2531 = vmatprep.subr.bf16.mxu0 0
    %2532 = vmatpush1.bf16.msra.mxu0 %v1856
    %2533 = vmatprep.subr.bf16.mxu0 0
    %2534 = vmatpush1.bf16.msra.mxu0 %v1863
    %2535 = vmatprep.subr.bf16.mxu0 0
    %2536 = vmatpush1.bf16.msra.mxu0 %v1870
    %2537 = vmatprep.subr.bf16.mxu0 0
    %2538 = vmatpush1.bf16.msra.mxu0 %v1877
    %2539 = vmatprep.subr.bf16.mxu0 0
    %2540 = vmatpush1.bf16.msra.mxu0 %v1884
    %2541 = vmatprep.subr.bf16.mxu0 0
    %2542 = vmatpush1.bf16.msra.mxu0 %v1891
    %2543 = vmatprep.subr.bf16.mxu0 0
    %2544 = vmatpush1.bf16.msra.mxu0 %v1898
    %2545 = vmatprep.subr.bf16.mxu0 0
    %2546 = vmatpush1.bf16.msra.mxu0 %v1905
    %2547 = vmatprep.subr.bf16.mxu0 0
    %2548 = vmatpush1.bf16.msra.mxu0 %v1912
    %2549 = vmatprep.subr.bf16.mxu0 0
    %2550 = vmatpush1.bf16.msra.mxu0 %v1919
    %2551 = vmatprep.subr.bf16.mxu0 0
    %2552 = vmatpush1.bf16.msra.mxu0 %v1926
    %2553 = vmatprep.mubr.bf16.mxu0 %v815
    %2554 = vmatmul.mubr.bf16.gmra.mrb[0].mxu0 %v814
    %v2555 = vpop.f32.mrb[0].mxu0
    %v2556 = vadd.f32 %v1103, %v2555
    %v2557 = vpop.f32.mrb[0].mxu0
    %v2558 = vpop.f32.mrb[0].mxu0
    %v2559 = vadd.f32 %v1103, %v2558
    %v2560 = vpop.f32.mrb[0].mxu0
    %2561 = vdwg.mxu0
    %2562 = vmatprep.subr.bf16.mxu0 0
    %2563 = vmatpush1.bf16.msra.mxu0 %v1933
    %2564 = vmatprep.subr.bf16.mxu0 0
    %2565 = vmatpush1.bf16.msra.mxu0 %v1940
    %2566 = vmatprep.subr.bf16.mxu0 0
    %2567 = vmatpush1.bf16.msra.mxu0 %v1947
    %2568 = vmatprep.subr.bf16.mxu0 0
    %2569 = vmatpush1.bf16.msra.mxu0 %v1954
    %2570 = vmatprep.subr.bf16.mxu0 0
    %2571 = vmatpush1.bf16.msra.mxu0 %v1961
    %2572 = vmatprep.subr.bf16.mxu0 0
    %2573 = vmatpush1.bf16.msra.mxu0 %v1968
    %2574 = vmatprep.subr.bf16.mxu0 0
    %2575 = vmatpush1.bf16.msra.mxu0 %v1975
    %2576 = vmatprep.subr.bf16.mxu0 0
    %2577 = vmatpush1.bf16.msra.mxu0 %v1982
    %2578 = vmatprep.subr.bf16.mxu0 0
    %2579 = vmatpush1.bf16.msra.mxu0 %v1989
    %2580 = vmatprep.subr.bf16.mxu0 0
    %2581 = vmatpush1.bf16.msra.mxu0 %v1996
    %2582 = vmatprep.subr.bf16.mxu0 0
    %2583 = vmatpush1.bf16.msra.mxu0 %v2003
    %2584 = vmatprep.subr.bf16.mxu0 0
    %2585 = vmatpush1.bf16.msra.mxu0 %v2010
    %2586 = vmatprep.subr.bf16.mxu0 0
    %2587 = vmatpush1.bf16.msra.mxu0 %v2017
    %2588 = vmatprep.subr.bf16.mxu0 0
    %2589 = vmatpush1.bf16.msra.mxu0 %v2024
    %2590 = vmatprep.subr.bf16.mxu0 0
    %2591 = vmatpush1.bf16.msra.mxu0 %v2031
    %2592 = vmatprep.subr.bf16.mxu0 0
    %2593 = vmatpush1.bf16.msra.mxu0 %v2038
    %2594 = vmatprep.mubr.bf16.mxu0 %v817
    %2595 = vmatmul.mubr.bf16.gmra.mrb[0].mxu0 %v816
    %v2596 = vpop.f32.mrb[0].mxu0
    %v2597 = vadd.f32 %v2556, %v2596
    %v2598 = vpop.f32.mrb[0].mxu0
    %v2599 = vpop.f32.mrb[0].mxu0
    %v2600 = vadd.f32 %v2559, %v2599
    %v2601 = vpop.f32.mrb[0].mxu0
    %2602 = vdwg.mxu0
    %v2603 = vxor.u32 %v2341, 2147483648
    %v2604 = vxor.u32 %v2343, 2147483648
    %v2605 = vxor.u32 %v2427, 2147483648
    %v2606 = vxor.u32 %v2429, 2147483648
    %v2607 = vxor.u32 %v2513, 2147483648
    %v2608 = vxor.u32 %v2515, 2147483648
    %v2609 = vxor.u32 %v2597, 2147483648
    %v2610 = vxor.u32 %v2345, 2147483648
    %v2611 = vxor.u32 %v2347, 2147483648
    %v2612 = vxor.u32 %v2431, 2147483648
    %v2613 = vxor.u32 %v2433, 2147483648
    %v2614 = vxor.u32 %v2517, 2147483648
    %v2615 = vxor.u32 %v2519, 2147483648
    %v2616 = vxor.u32 %v2600, 2147483648
    %v2617 = vmul.f32 %v2603, 1.442695
    %v2618 = vpow.pop %v2617
    %v2619 = vmul.f32 %v2604, 1.442695
    %v2620 = vpow.pop %v2619
    %v2621 = vmul.f32 %v2605, 1.442695
    %v2622 = vpow.pop %v2621
    %v2623 = vmul.f32 %v2606, 1.442695
    %v2624 = vpow.pop %v2623
    %v2625 = vmul.f32 %v2607, 1.442695
    %v2626 = vpow.pop %v2625
    %v2627 = vmul.f32 %v2608, 1.442695
    %v2628 = vpow.pop %v2627
    %v2629 = vmul.f32 %v2609, 1.442695
    %v2630 = vpow.pop %v2629
    %v2631 = vmul.f32 %v2610, 1.442695
    %v2632 = vpow.pop %v2631
    %v2633 = vmul.f32 %v2611, 1.442695
    %v2634 = vpow.pop %v2633
    %v2635 = vmul.f32 %v2612, 1.442695
    %v2636 = vpow.pop %v2635
    %v2637 = vmul.f32 %v2613, 1.442695
    %v2638 = vpow.pop %v2637
    %v2639 = vmul.f32 %v2614, 1.442695
    %v2640 = vpow.pop %v2639
    %v2641 = vmul.f32 %v2615, 1.442695
    %v2642 = vpow.pop %v2641
    %v2643 = vmul.f32 %v2616, 1.442695
    %v2644 = vpow.pop %v2643
    %v2645 = vadd.f32 %v2618, 1.0
    %v2646 = vadd.f32 %v2620, 1.0
    %v2647 = vadd.f32 %v2622, 1.0
    %v2648 = vadd.f32 %v2624, 1.0
    %v2649 = vadd.f32 %v2626, 1.0
    %v2650 = vadd.f32 %v2628, 1.0
    %v2651 = vadd.f32 %v2630, 1.0
    %v2652 = vadd.f32 %v2632, 1.0
    %v2653 = vadd.f32 %v2634, 1.0
    %v2654 = vadd.f32 %v2636, 1.0
    %v2655 = vadd.f32 %v2638, 1.0
    %v2656 = vadd.f32 %v2640, 1.0
    %v2657 = vadd.f32 %v2642, 1.0
    %v2658 = vadd.f32 %v2644, 1.0
    %v2659 = vrcp.pop %v2645
    %v2660 = vmul.f32 1.0, %v2659
    %v2661 = vrcp.pop %v2646
    %v2662 = vmul.f32 1.0, %v2661
    %v2663 = vrcp.pop %v2647
    %v2664 = vmul.f32 1.0, %v2663
    %v2665 = vrcp.pop %v2648
    %v2666 = vmul.f32 1.0, %v2665
    %v2667 = vrcp.pop %v2649
    %v2668 = vmul.f32 1.0, %v2667
    %v2669 = vrcp.pop %v2650
    %v2670 = vmul.f32 1.0, %v2669
    %v2671 = vrcp.pop %v2651
    %v2672 = vmul.f32 1.0, %v2671
    %v2673 = vrcp.pop %v2652
    %v2674 = vmul.f32 1.0, %v2673
    %v2675 = vrcp.pop %v2653
    %v2676 = vmul.f32 1.0, %v2675
    %v2677 = vrcp.pop %v2654
    %v2678 = vmul.f32 1.0, %v2677
    %v2679 = vrcp.pop %v2655
    %v2680 = vmul.f32 1.0, %v2679
    %v2681 = vrcp.pop %v2656
    %v2682 = vmul.f32 1.0, %v2681
    %v2683 = vrcp.pop %v2657
    %v2684 = vmul.f32 1.0, %v2683
    %v2685 = vrcp.pop %v2658
    %v2686 = vmul.f32 1.0, %v2685
    %2687 = vst [vmem:[#allocation2] sm:$0xff] %v2660
    %2688 = vst [vmem:[#allocation2 + $0x8] sm:$0xff] %v2662
    %2689 = vst [vmem:[#allocation2 + $0x10] sm:$0xff] %v2664
    %2690 = vst [vmem:[#allocation2 + $0x18] sm:$0xff] %v2666
    %2691 = vst [vmem:[#allocation2 + $0x20] sm:$0xff] %v2668
    %2692 = vst [vmem:[#allocation2 + $0x28] sm:$0xff] %v2670
    %vm2693 = vcmask 130048
    %2694 = vst.msk [vmem:[#allocation2 + $0x30] sm:$0xff] %vm2693, %v2672
    %2695 = vst [vmem:[#allocation2 + $0x38] sm:$0xff] %v2674
    %2696 = vst [vmem:[#allocation2 + $0x40] sm:$0xff] %v2676
    %2697 = vst [vmem:[#allocation2 + $0x48] sm:$0xff] %v2678
    %2698 = vst [vmem:[#allocation2 + $0x50] sm:$0xff] %v2680
    %2699 = vst [vmem:[#allocation2 + $0x58] sm:$0xff] %v2682
    %2700 = vst [vmem:[#allocation2 + $0x60] sm:$0xff] %v2684
    %2701 = vst.msk [vmem:[#allocation2 + $0x68] sm:$0xff] %vm2693, %v2686
    // Predicated region
    $region38: #{tpu_custom_call.1} parent=1 // pred_check
      _
    $region39: #{tpu_custom_call.1} parent=1 // pred_check_branch
      %2703 = sbr.rel (0) target = $region41
    $region40: #{tpu_custom_call.1} parent=1 // pred_region
      %s2705 = ssub.s32 1792, 1792
      %2706 = vsyncadd [#allocation3], %s2705
      %s2707 = sshll.u32 [#allocation2], 4
      %s2708 = int_to_ptr.vmem [resolvable:$true] %s2707
      %2713 = dma.vmem_to_hbm [thread:$0]  %s2708, 1792, %s9, [#allocation3], 896, 896, 56
    $region41: #{tpu_custom_call.1} parent=1 // pred_fallthru
      _
    // Predicated region
    $region42: #{tpu_custom_call.1} parent=1 // pred_check
      _
    $region43: #{tpu_custom_call.1} parent=1 // pred_check_branch
      %2715 = sbr.rel (0) target = $region45
    $region44: #{tpu_custom_call.1} parent=1 // pred_region
      %2716 = dma.done [#allocation3], 1792
    $region45: #{tpu_custom_call.1} parent=1 // pred_fallthru
      _
    %2717 = vsyncpa [#allocation3], 1

</llo_original>
